<compile_context>
chip_gen: v5e
topology: v5e:2x2
jax: 0.10.0
libtpu: 0.0.40
codegen_flags: <defaults>
</compile_context>

<pallas_src>
import jax
import jax.numpy as jnp
from jax.experimental import pallas as pl
from jax.experimental.pallas import tpu as pltpu

_LANE = 128
_BN_EPS = 1e-5


def _round_up(n, m):
    return ((n + m - 1) // m) * m


# ----------------------------------------------------------------------------- kernel
def _order_embed_kernel(x_ref, w1_ref, c1_ref, w2_ref, c2_ref, o_ref):
    """Fused: relu(x @ W1' + c1) @ W2' + c2 -> relu.  (BN + bias pre-folded into W/c.)"""
    # In-kernel cast to the matmul operand dtype (no-op if x already matches).
    x = x_ref[...].astype(w1_ref.dtype)                                # [tb, Kp]
    h = jnp.dot(x, w1_ref[...], preferred_element_type=jnp.float32)    # MXU, f32 acc
    h = jnp.maximum(h + c1_ref[...], 0.0)                              # folded bias+BN, ReLU

    z = jnp.dot(h.astype(w2_ref.dtype), w2_ref[...],
                preferred_element_type=jnp.float32)                    # MXU, f32 acc
    o_ref[...] = jnp.maximum(z + c2_ref[...], 0.0).astype(o_ref.dtype)


# ----------------------------------------------------------------------------- wrapper
def _pick_batch_tile(B, cap=2048):
    """Largest multiple-of-8 divisor of B (<= cap) with an even step count (v7x 2-TC
    balance); falls back to the single full block when B itself fits under the cap."""
    divs = [t for t in range(8, min(B, cap) + 1, 8) if B % t == 0]
    even_steps = [t for t in divs if (B // t) % 2 == 0]
    if even_steps:
        return max(even_steps)
    if divs and B > cap:
        return max(divs)
    return B


def _vmem_budget_bytes(tb, Kp, H1p, Dp, x_itemsize, w_itemsize):
    """Conservative (worst-case double-buffered) VMEM working-set estimate."""
    return (2 * tb * Kp * x_itemsize                   # x tile, double buffered
            + 2 * tb * Dp * 4                          # f32 out tile, double buffered
            + 2 * (Kp * H1p + H1p * Dp) * w_itemsize   # weights (worst case x2)
            + 2 * (H1p + Dp) * 4                       # folded shifts
            + tb * H1p * 4)                            # hidden activation


def _build_call(B_pad, tb, Kp, H1p, Dp, vmem_limit, single_buffer_weights):
    if single_buffer_weights:
        const2d = lambda shape: pl.BlockSpec(shape, lambda i: (0, 0),
                                             pipeline_mode=pl.Buffered(1))
    else:
        const2d = lambda shape: pl.BlockSpec(shape, lambda i: (0, 0))

    return pl.pallas_call(
        _order_embed_kernel,
        out_shape=jax.ShapeDtypeStruct((B_pad, Dp), jnp.float32),
        grid_spec=pltpu.PrefetchScalarGridSpec(
            num_scalar_prefetch=0,
            grid=(B_pad // tb,),
            in_specs=[
                pl.BlockSpec((tb, Kp), lambda i: (i, 0)),   # x (tiled over batch)
                const2d((Kp, H1p)),                         # folded W1 (constant block)
                const2d((1, H1p)),                          # folded shift 1
                const2d((H1p, Dp)),                         # folded W2
                const2d((1, Dp)),                           # folded shift 2
            ],
            out_specs=pl.BlockSpec((tb, Dp), lambda i: (i, 0)),
        ),
        compiler_params=pltpu.CompilerParams(
            dimension_semantics=("parallel",),              # megacore over batch tiles
            vmem_limit_bytes=vmem_limit,
        ),
    )


def order_embedding_forward(x, prepared, *, batch_tile=None, trim=False):
    """x: [B, bert_dim] -> order embeddings.

    Returns the lane-padded [B, 128] buffer by default (padded columns are exactly
    zero) so no extra HBM slice pass is paid; pass trim=True for the exact
    [B, order_dim] shape (or slice downstream where it can fuse).
    """
    B = x.shape[0]
    w1, c1, w2, c2 = prepared["w1"], prepared["c1"], prepared["w2"], prepared["c2"]
    Kp, H1p = w1.shape
    Dp = w2.shape[1]
    D = prepared["order_dim"]

    # Pad batch to a multiple of 8 so odd batches still pipeline / split across TCs.
    B_pad = _round_up(max(B, 8), 8)
    if B_pad != B:
        x = jnp.pad(x, ((0, B_pad - B), (0, 0)))
    # Pad the contraction dim if needed (no-op for bert_dim=768).
    if x.shape[1] != Kp:
        x = jnp.pad(x, ((0, 0), (0, Kp - x.shape[1])))
    # NOTE: no wrapper-side astype — the operand-dtype cast happens inside the kernel.

    tb = batch_tile or _pick_batch_tile(B_pad)
    assert B_pad % tb == 0, "padded batch must be divisible by the batch tile"
    assert tb % 8 == 0, "batch tile must be a multiple of 8"

    budget = _vmem_budget_bytes(tb, Kp, H1p, Dp,
                                jnp.dtype(x.dtype).itemsize,
                                jnp.dtype(w1.dtype).itemsize)
    vmem_limit = int(min(max(2 * budget, 32 * 1024 * 1024), 56 * 1024 * 1024))

    args = (x, w1, c1, w2, c2)
    try:
        out = _build_call(B_pad, tb, Kp, H1p, Dp, vmem_limit, True)(*args)
    except Exception:
        # pipeline_mode=pl.Buffered(1) unsupported on this JAX build -> default buffering.
        out = _build_call(B_pad, tb, Kp, H1p, Dp, vmem_limit, False)(*args)

    if trim:
        return out[:B, :D]
    return out[:B] if B_pad != B else out


# ----------------------------------------------------------------------------- params
def _xavier_uniform(key, fan_in, fan_out):
    bound = jnp.sqrt(6.0 / (fan_in + fan_out))
    return jax.random.uniform(key, (fan_in, fan_out), jnp.float32, -bound, bound)


def init_params(key, bert_dim=768, order_dim=50):
    """Raw PyTorch-layout params (Linear weights as [in, out], BN running stats).

    Fresh nn.BatchNorm1d has gamma=1, beta=0, mean=0, var=1; non-trivial
    (trained-model-like) stats are used so the BN fold is actually exercised.
    """
    H1 = order_dim * 2
    k1, k2, k3 = jax.random.split(key, 3)

    def bn_stats(k, n):
        kg, kb, km, kv = jax.random.split(k, 4)
        return {
            "gamma": 1.0 + 0.1 * jax.random.normal(kg, (n,), jnp.float32),
            "beta": 0.1 * jax.random.normal(kb, (n,), jnp.float32),
            "mean": 0.1 * jax.random.normal(km, (n,), jnp.float32),
            "var": jnp.abs(1.0 + 0.1 * jax.random.normal(kv, (n,), jnp.float32)),
        }

    kb1, kb2 = jax.random.split(k3)
    return {
        "w1": _xavier_uniform(k1, bert_dim, H1),            # Linear(bert_dim, 2*order_dim)
        "b1": jnp.zeros((H1,), jnp.float32),                # zeros per _init_weights
        "bn1": bn_stats(kb1, H1),
        "w2": _xavier_uniform(k2, H1, order_dim),           # Linear(2*order_dim, order_dim)
        "b2": jnp.zeros((order_dim,), jnp.float32),
        "bn2": bn_stats(kb2, order_dim),
    }


def prepare_params(raw, *, matmul_dtype=jnp.bfloat16, lane=_LANE):
    """One-time constant folding (BN + bias into weights) and zero-padding to lane width.

    matmul_dtype=bf16 (default) uses the native MXU path with f32 accumulation
    (~1e-3 relative); pass jnp.float32 when 1e-4 accuracy is required.
    """
    def fold(w, b, bn):
        scale = bn["gamma"] / jnp.sqrt(bn["var"] + _BN_EPS)          # [out]
        shift = bn["beta"] - bn["mean"] * scale
        return w * scale[None, :], b * scale + shift                 # W', c

    w1f, c1 = fold(raw["w1"], raw["b1"], raw["bn1"])
    w2f, c2 = fold(raw["w2"], raw["b2"], raw["bn2"])

    K, H1 = w1f.shape
    D = w2f.shape[1]
    # Keep padding at 128 (NOT 256): same MXU pass count on v6e/v7x, native width on v5e.
    Kp, H1p, Dp = _round_up(K, lane), _round_up(H1, lane), _round_up(D, lane)

    w1p = jnp.zeros((Kp, H1p), jnp.float32).at[:K, :H1].set(w1f).astype(matmul_dtype)
    w2p = jnp.zeros((H1p, Dp), jnp.float32).at[:H1, :D].set(w2f).astype(matmul_dtype)
    c1p = jnp.zeros((1, H1p), jnp.float32).at[0, :H1].set(c1)        # shifts stay f32
    c2p = jnp.zeros((1, Dp), jnp.float32).at[0, :D].set(c2)

    return {"w1": w1p, "c1": c1p, "w2": w2p, "c2": c2p,
            "bert_dim": K, "order_dim": D}


# ----------------------------------------------------------------------------- reference
def reference_forward(x, raw):
    """Plain-JAX reference of the same (inference-mode) forward pass, unfolded."""
    def bn(z, p):
        scale = p["gamma"] / jnp.sqrt(p["var"] + _BN_EPS)
        return z * scale + (p["beta"] - p["mean"] * scale)

    h = jnp.maximum(bn(x @ raw["w1"] + raw["b1"], raw["bn1"]), 0.0)
    z = jnp.maximum(bn(h @ raw["w2"] + raw["b2"], raw["bn2"]), 0.0)
    return z


if __name__ == "__main__":
    key = jax.random.PRNGKey(0)
    k_param, k_x = jax.random.split(key)

    BATCH, BERT_DIM, ORDER_DIM = 16, 768, 50
    raw = init_params(k_param, bert_dim=BERT_DIM, order_dim=ORDER_DIM)
    x = jax.random.normal(k_x, (BATCH, BERT_DIM), jnp.float32)
    ref = reference_forward(x, raw)

    # Default path: bf16 matmul operands, in-kernel cast, padded (no-slice) output.
    prepared_bf16 = prepare_params(raw)                              # bf16 default
    out_pad = order_embedding_forward(x, prepared_bf16)              # auto tile -> tb=8, grid=2
    out_pad = jax.block_until_ready(out_pad)
    assert out_pad.shape == (BATCH, _LANE)
    emb_bf16 = out_pad[:, :ORDER_DIM]                                # downstream slice
    assert jnp.allclose(emb_bf16, ref, atol=5e-2, rtol=5e-2)         # bf16-operand tolerance
    assert bool(jnp.all(out_pad[:, ORDER_DIM:] == 0.0))              # padded columns exact zero
    assert bool(jnp.all(out_pad >= 0.0))                             # non-negative (post-ReLU)

    # f32-operand path, trimmed output, single-block tile: tight 1e-4 check.
    prepared_f32 = prepare_params(raw, matmul_dtype=jnp.float32)
    out_f32 = order_embedding_forward(x, prepared_f32, batch_tile=16, trim=True)
    out_f32 = jax.block_until_ready(out_f32)
    assert out_f32.shape == (BATCH, ORDER_DIM)
    assert jnp.allclose(out_f32, ref, atol=1e-4, rtol=1e-4)
    assert bool(jnp.all(out_f32 >= 0.0))

    print("KERNEL_OK")
</pallas_src>

<mosaic_0001>
module attributes {stable_mosaic.version = 11 : i64} {
  func.func @_order_embed_kernel(%arg0: i32, %arg1: memref<8x768xf32, #tpu.memory_space<vmem>>, %arg2: memref<768x128xbf16, #tpu.memory_space<vmem>>, %arg3: memref<1x128xf32, #tpu.memory_space<vmem>>, %arg4: memref<128x128xbf16, #tpu.memory_space<vmem>>, %arg5: memref<1x128xf32, #tpu.memory_space<vmem>>, %arg6: memref<8x128xf32, #tpu.memory_space<vmem>>) attributes {dimension_semantics = [#tpu.dimension_semantics<parallel>], iteration_bounds = array<i64: 2>, scalar_prefetch = 0 : i64, scratch_operands = 0 : i64, tpu.core_type = #tpu.core_type<tc>, window_params = [{transform_indices = @transform_0, window_bounds = array<i64: 8, 768>}, {pipeline_mode = #tpu.pipeline_mode<synchronous>, transform_indices = @transform_1, window_bounds = array<i64: 768, 128>}, {pipeline_mode = #tpu.pipeline_mode<synchronous>, transform_indices = @transform_2, window_bounds = array<i64: 1, 128>}, {pipeline_mode = #tpu.pipeline_mode<synchronous>, transform_indices = @transform_3, window_bounds = array<i64: 128, 128>}, {pipeline_mode = #tpu.pipeline_mode<synchronous>, transform_indices = @transform_4, window_bounds = array<i64: 1, 128>}, {transform_indices = @transform_5, window_bounds = array<i64: 8, 128>}]} {
    %c0 = arith.constant 0 : index
    %c0_0 = arith.constant 0 : index
    %0 = vector.load %arg1[%c0, %c0_0] : memref<8x768xf32, #tpu.memory_space<vmem>>, vector<8x768xf32>
    %1 = arith.truncf %0 : vector<8x768xf32> to vector<8x768xbf16>
    %c0_1 = arith.constant 0 : index
    %c0_2 = arith.constant 0 : index
    %2 = vector.load %arg2[%c0_1, %c0_2] : memref<768x128xbf16, #tpu.memory_space<vmem>>, vector<768x128xbf16>
    %cst = arith.constant dense<0.000000e+00> : vector<8x128xf32>
    %3 = tpu.matmul %1, %2, %cst {dimension_numbers = #tpu.dot_dimension_numbers<[1], [0], [0], [1], [0, 0, 1, 1], [], []>} : vector<8x768xbf16>, vector<768x128xbf16>, vector<8x128xf32> -> vector<8x128xf32>
    %c0_3 = arith.constant 0 : index
    %c0_4 = arith.constant 0 : index
    %4 = vector.load %arg3[%c0_3, %c0_4] : memref<1x128xf32, #tpu.memory_space<vmem>>, vector<1x128xf32>
    %5 = vector.broadcast %4 : vector<1x128xf32> to vector<8x128xf32>
    %6 = arith.addf %3, %5 : vector<8x128xf32>
    %cst_5 = arith.constant 0.000000e+00 : f32
    %7 = vector.broadcast %cst_5 : f32 to vector<8x128xf32>
    %8 = arith.maximumf %6, %7 : vector<8x128xf32>
    %9 = arith.truncf %8 : vector<8x128xf32> to vector<8x128xbf16>
    %c0_6 = arith.constant 0 : index
    %c0_7 = arith.constant 0 : index
    %10 = vector.load %arg4[%c0_6, %c0_7] : memref<128x128xbf16, #tpu.memory_space<vmem>>, vector<128x128xbf16>
    %cst_8 = arith.constant dense<0.000000e+00> : vector<8x128xf32>
    %11 = tpu.matmul %9, %10, %cst_8 {dimension_numbers = #tpu.dot_dimension_numbers<[1], [0], [0], [1], [0, 0, 1, 1], [], []>} : vector<8x128xbf16>, vector<128x128xbf16>, vector<8x128xf32> -> vector<8x128xf32>
    %c0_9 = arith.constant 0 : index
    %c0_10 = arith.constant 0 : index
    %12 = vector.load %arg5[%c0_9, %c0_10] : memref<1x128xf32, #tpu.memory_space<vmem>>, vector<1x128xf32>
    %13 = vector.broadcast %12 : vector<1x128xf32> to vector<8x128xf32>
    %14 = arith.addf %11, %13 : vector<8x128xf32>
    %cst_11 = arith.constant 0.000000e+00 : f32
    %15 = vector.broadcast %cst_11 : f32 to vector<8x128xf32>
    %16 = arith.maximumf %14, %15 : vector<8x128xf32>
    %c0_12 = arith.constant 0 : index
    %c0_13 = arith.constant 0 : index
    %17 = vector.load %arg6[%c0_12, %c0_13] : memref<8x128xf32, #tpu.memory_space<vmem>>, vector<8x128xf32>
    tpu.vector_store %arg6[%c0_12, %c0_13], %16 {strides = array<i32>} : memref<8x128xf32, #tpu.memory_space<vmem>>, vector<8x128xf32>,
    return
  }
  func.func @transform_0(%arg0: i32) -> (i32, i32) {
    %c0_i32 = arith.constant 0 : i32
    %c0_i32_0 = arith.constant 0 : i32
    return %arg0, %c0_i32 : i32, i32
  }
  func.func @transform_1(%arg0: i32) -> (i32, i32) {
    %c0_i32 = arith.constant 0 : i32
    %c0_i32_0 = arith.constant 0 : i32
    %c0_i32_1 = arith.constant 0 : i32
    return %c0_i32, %c0_i32_0 : i32, i32
  }
  func.func @transform_2(%arg0: i32) -> (i32, i32) {
    %c0_i32 = arith.constant 0 : i32
    %c0_i32_0 = arith.constant 0 : i32
    %c0_i32_1 = arith.constant 0 : i32
    return %c0_i32, %c0_i32_0 : i32, i32
  }
  func.func @transform_3(%arg0: i32) -> (i32, i32) {
    %c0_i32 = arith.constant 0 : i32
    %c0_i32_0 = arith.constant 0 : i32
    %c0_i32_1 = arith.constant 0 : i32
    return %c0_i32, %c0_i32_0 : i32, i32
  }
  func.func @transform_4(%arg0: i32) -> (i32, i32) {
    %c0_i32 = arith.constant 0 : i32
    %c0_i32_0 = arith.constant 0 : i32
    %c0_i32_1 = arith.constant 0 : i32
    return %c0_i32, %c0_i32_0 : i32, i32
  }
  func.func @transform_5(%arg0: i32) -> (i32, i32) {
    %c0_i32 = arith.constant 0 : i32
    %c0_i32_0 = arith.constant 0 : i32
    return %arg0, %c0_i32 : i32, i32
  }
}

module attributes {stable_mosaic.version = 11 : i64} {
  func.func @_order_embed_kernel(%arg0: i32, %arg1: memref<8x768xf32, #tpu.memory_space<vmem>>, %arg2: memref<768x128xbf16, #tpu.memory_space<vmem>>, %arg3: memref<1x128xf32, #tpu.memory_space<vmem>>, %arg4: memref<128x128xbf16, #tpu.memory_space<vmem>>, %arg5: memref<1x128xf32, #tpu.memory_space<vmem>>, %arg6: memref<8x128xf32, #tpu.memory_space<vmem>>) attributes {dimension_semantics = [#tpu.dimension_semantics<parallel>], iteration_bounds = array<i64: 2>, scalar_prefetch = 0 : i64, scratch_operands = 0 : i64, tpu.core_type = #tpu.core_type<tc>, window_params = [{transform_indices = @transform_0, window_bounds = array<i64: 8, 768>}, {pipeline_mode = #tpu.pipeline_mode<synchronous>, transform_indices = @transform_1, window_bounds = array<i64: 768, 128>}, {pipeline_mode = #tpu.pipeline_mode<synchronous>, transform_indices = @transform_2, window_bounds = array<i64: 1, 128>}, {pipeline_mode = #tpu.pipeline_mode<synchronous>, transform_indices = @transform_3, window_bounds = array<i64: 128, 128>}, {pipeline_mode = #tpu.pipeline_mode<synchronous>, transform_indices = @transform_4, window_bounds = array<i64: 1, 128>}, {transform_indices = @transform_5, window_bounds = array<i64: 8, 128>}]} {
    %c0 = arith.constant 0 : index
    %c0_0 = arith.constant 0 : index
    %0 = vector.load %arg1[%c0, %c0_0] : memref<8x768xf32, #tpu.memory_space<vmem>>, vector<8x768xf32>
    %1 = arith.truncf %0 : vector<8x768xf32> to vector<8x768xbf16>
    %c0_1 = arith.constant 0 : index
    %c0_2 = arith.constant 0 : index
    %2 = vector.load %arg2[%c0_1, %c0_2] : memref<768x128xbf16, #tpu.memory_space<vmem>>, vector<768x128xbf16>
    %cst = arith.constant dense<0.000000e+00> : vector<8x128xf32>
    %3 = tpu.matmul %1, %2, %cst {dimension_numbers = #tpu.dot_dimension_numbers<[1], [0], [0], [1], [0, 0, 1, 1], [], []>} : vector<8x768xbf16>, vector<768x128xbf16>, vector<8x128xf32> -> vector<8x128xf32>
    %c0_3 = arith.constant 0 : index
    %c0_4 = arith.constant 0 : index
    %4 = vector.load %arg3[%c0_3, %c0_4] : memref<1x128xf32, #tpu.memory_space<vmem>>, vector<1x128xf32>
    %5 = vector.broadcast %4 : vector<1x128xf32> to vector<8x128xf32>
    %6 = arith.addf %3, %5 : vector<8x128xf32>
    %cst_5 = arith.constant 0.000000e+00 : f32
    %7 = vector.broadcast %cst_5 : f32 to vector<8x128xf32>
    %8 = arith.maximumf %6, %7 : vector<8x128xf32>
    %9 = arith.truncf %8 : vector<8x128xf32> to vector<8x128xbf16>
    %c0_6 = arith.constant 0 : index
    %c0_7 = arith.constant 0 : index
    %10 = vector.load %arg4[%c0_6, %c0_7] : memref<128x128xbf16, #tpu.memory_space<vmem>>, vector<128x128xbf16>
    %cst_8 = arith.constant dense<0.000000e+00> : vector<8x128xf32>
    %11 = tpu.matmul %9, %10, %cst_8 {dimension_numbers = #tpu.dot_dimension_numbers<[1], [0], [0], [1], [0, 0, 1, 1], [], []>} : vector<8x128xbf16>, vector<128x128xbf16>, vector<8x128xf32> -> vector<8x128xf32>
    %c0_9 = arith.constant 0 : index
    %c0_10 = arith.constant 0 : index
    %12 = vector.load %arg5[%c0_9, %c0_10] : memref<1x128xf32, #tpu.memory_space<vmem>>, vector<1x128xf32>
    %13 = vector.broadcast %12 : vector<1x128xf32> to vector<8x128xf32>
    %14 = arith.addf %11, %13 : vector<8x128xf32>
    %cst_11 = arith.constant 0.000000e+00 : f32
    %15 = vector.broadcast %cst_11 : f32 to vector<8x128xf32>
    %16 = arith.maximumf %14, %15 : vector<8x128xf32>
    %c0_12 = arith.constant 0 : index
    %c0_13 = arith.constant 0 : index
    %17 = vector.load %arg6[%c0_12, %c0_13] : memref<8x128xf32, #tpu.memory_space<vmem>>, vector<8x128xf32>
    tpu.vector_store %arg6[%c0_12, %c0_13], %16 {strides = array<i32>} : memref<8x128xf32, #tpu.memory_space<vmem>>, vector<8x128xf32>,
    return
  }
  func.func @transform_0(%arg0: i32) -> (i32, i32) {
    %c0_i32 = arith.constant 0 : i32
    %c0_i32_0 = arith.constant 0 : i32
    return %arg0, %c0_i32 : i32, i32
  }
  func.func @transform_1(%arg0: i32) -> (i32, i32) {
    %c0_i32 = arith.constant 0 : i32
    %c0_i32_0 = arith.constant 0 : i32
    %c0_i32_1 = arith.constant 0 : i32
    return %c0_i32, %c0_i32_0 : i32, i32
  }
  func.func @transform_2(%arg0: i32) -> (i32, i32) {
    %c0_i32 = arith.constant 0 : i32
    %c0_i32_0 = arith.constant 0 : i32
    %c0_i32_1 = arith.constant 0 : i32
    return %c0_i32, %c0_i32_0 : i32, i32
  }
  func.func @transform_3(%arg0: i32) -> (i32, i32) {
    %c0_i32 = arith.constant 0 : i32
    %c0_i32_0 = arith.constant 0 : i32
    %c0_i32_1 = arith.constant 0 : i32
    return %c0_i32, %c0_i32_0 : i32, i32
  }
  func.func @transform_4(%arg0: i32) -> (i32, i32) {
    %c0_i32 = arith.constant 0 : i32
    %c0_i32_0 = arith.constant 0 : i32
    %c0_i32_1 = arith.constant 0 : i32
    return %c0_i32, %c0_i32_0 : i32, i32
  }
  func.func @transform_5(%arg0: i32) -> (i32, i32) {
    %c0_i32 = arith.constant 0 : i32
    %c0_i32_0 = arith.constant 0 : i32
    return %arg0, %c0_i32 : i32, i32
  }
}

</mosaic_0001>

<llo_original>
// kernel: tpu_custom_call.1
$region0: #{tpu_custom_call.1}
  #allocation0 [shape = 'u32[]', space=smem, size = 0x4, offset = 0x4, fixed_abs, tag = 'smem constant byte address 0x4 - core index']
  #allocation1 [shape = 'u32[72,128]{1,0:T(1,128)}', space=vmem, size = 0x9000, scoped, tag = 'internal scratch']
  %s0 = inlined_call_operand.hbm [shape: f32[16,768], index: 0, kind: input, shape index: {}]
  %s1 = inlined_call_operand.hbm [shape: bf16[768,128], index: 1, kind: input, shape index: {}]
  %s2 = inlined_call_operand.vmem [shape: f32[1,128], index: 2, kind: input, shape index: {}]
  %s3 = inlined_call_operand.hbm [shape: bf16[128,128], index: 3, kind: input, shape index: {}]
  %s4 = inlined_call_operand.vmem [shape: f32[1,128], index: 4, kind: input, shape index: {}]
  %s5 = inlined_call_operand.hbm [shape: f32[16,128], index: 5, kind: output, shape index: {}]
  %s6 = sld [smem:[#allocation0]]
  $region65: #{tpu_custom_call.1} parent=0
    _
  %s8 = ssub.s32 1, %s6
  %s9 = scalar_select 0, %s8, %s6
  $region1: #{tpu_custom_call.1} parent=0
    #allocation2 [shape = 'u8[49152]{0}', space=vmem, size = 0xc000, scoped, tag = 'input window, operand 0']
    #allocation3 [shape = 's32[2]{0}', space=sflag, size = 0x8, scoped, tag = 'scoped memory for tpu_custom_call.1']
    #allocation4 [shape = 's32[2]{0}', space=sflag, size = 0x8, scoped, tag = 'scoped memory for tpu_custom_call.1']
    #allocation5 [shape = 'u8[196608]{0}', space=vmem, size = 0x30000, scoped, tag = 'input window, operand 1, single buffered']
    #allocation6 [shape = 's32[1]{0}', space=sflag, size = 0x4, scoped, tag = 'scoped memory for tpu_custom_call.1']
    #allocation7 [shape = 'u8[32768]{0}', space=vmem, size = 0x8000, scoped, tag = 'input window, operand 3, single buffered']
    #allocation8 [shape = 'u8[8192]{0}', space=vmem, size = 0x2000, scoped, tag = 'output window, operand 0']
    %10 = vsyncpa [#allocation3], 0
    %s11 = scalar_lea.sflag [#allocation3], 1
    %12 = vsyncpa %s11, 0
    %13 = vsyncpa [#allocation6], 0
    %14 = vsyncpa [#allocation4], 0
    %s15 = scalar_lea.sflag [#allocation4], 1
    %16 = vsyncpa %s15, 0
    loop: start=0, step=1, limit=4
    $region2: #{tpu_custom_call.1} parent=1 // loop_pre_header
      _
    $region3: #{tpu_custom_call.1} parent=1 // loop_header
      %s18 = sphi 0, %s22
      %p19 = scmp.ge.s32.totalorder %s18, 4
      %s28 = sphi 0, %s30
      %s31 = sphi 0, %s28
      %s32 = sphi 0, %s31
      %s48 = sphi 0, %s32
      %s52 = sphi 0, %s52
      %s54 = sphi 0, %s52
      %s55 = sphi 0, %s54
      %s69 = sphi 0, %s55
      %s73 = sphi 0, %s73
      %s75 = sphi 0, %s73
      %s76 = sphi 0, %s75
      %s90 = sphi 0, %s76
      %s94 = sphi 0, %s94
      %s96 = sphi 0, %s94
      %s97 = sphi 0, %s96
      %s111 = sphi 0, %s97
      %s115 = sphi 0, %s115
      %s117 = sphi 0, %s115
      %s118 = sphi 0, %s117
      %s132 = sphi 0, %s118
      %s138 = sphi 0, %s140
      %s141 = sphi 0, %s138
      %s142 = sphi 0, %s141
      %s158 = sphi 0, %s142
    $region4: #{tpu_custom_call.1} parent=1 // loop_header_branch
      %21 = sbr.rel (%p19) target = $region8
    $region5: #{tpu_custom_call.1} parent=1 // loop_body
      %s23 = ssub.s32 %s18, 1
      %s24 = ssub.s32 %s18, 2
      %s25 = sadd.s32 %s18, 1
      %s26 = ssub.s32 %s18, %s25
      %p27 = scmp.eq.s32.totalorder %s26, 0
      %s29 = sadd.s32 %s28, 1
      %s30 = scalar_select %p27, %s28, %s29
      %p33 = pneg %p27
      %p34 = scmp.eq.s32.totalorder %s18, 1
      %p35 = por %p33, %p34
      %p36 = scmp.ne.s32.totalorder %s28, %s31
      %p37 = scmp.eq.s32.totalorder %s18, 0
      %p38 = por %p36, %p37
      %p39 = scmp.ne.s32.totalorder %s28, %s31
      %p40 = scmp.eq.s32.totalorder %s23, 1
      %p41 = por %p39, %p40
      %p42 = scmp.ne.s32.totalorder %s31, %s32
      %p43 = scmp.eq.s32.totalorder %s23, 0
      %p44 = por %p42, %p43
      %p45 = scmp.ne.s32.totalorder %s31, %s32
      %p46 = scmp.eq.s32.totalorder %s24, 1
      %p47 = por %p45, %p46
      %p49 = scmp.ne.s32.totalorder %s32, %s48
      %p50 = scmp.eq.s32.totalorder %s24, 0
      %p51 = por %p49, %p50
      %s53 = sadd.s32 %s52, 1
      %p56 = scmp.eq.s32.totalorder %s18, 1
      %p57 = scmp.ne.s32.totalorder %s52, %s54
      %p58 = scmp.eq.s32.totalorder %s18, 0
      %p59 = por %p57, %p58
      %p60 = scmp.ne.s32.totalorder %s52, %s54
      %p61 = scmp.eq.s32.totalorder %s23, 1
      %p62 = por %p60, %p61
      %p63 = scmp.ne.s32.totalorder %s54, %s55
      %p64 = scmp.eq.s32.totalorder %s23, 0
      %p65 = por %p63, %p64
      %p66 = scmp.ne.s32.totalorder %s54, %s55
      %p67 = scmp.eq.s32.totalorder %s24, 1
      %p68 = por %p66, %p67
      %p70 = scmp.ne.s32.totalorder %s55, %s69
      %p71 = scmp.eq.s32.totalorder %s24, 0
      %p72 = por %p70, %p71
      %s74 = sadd.s32 %s73, 1
      %p77 = scmp.eq.s32.totalorder %s18, 1
      %p78 = scmp.ne.s32.totalorder %s73, %s75
      %p79 = scmp.eq.s32.totalorder %s18, 0
      %p80 = por %p78, %p79
      %p81 = scmp.ne.s32.totalorder %s73, %s75
      %p82 = scmp.eq.s32.totalorder %s23, 1
      %p83 = por %p81, %p82
      %p84 = scmp.ne.s32.totalorder %s75, %s76
      %p85 = scmp.eq.s32.totalorder %s23, 0
      %p86 = por %p84, %p85
      %p87 = scmp.ne.s32.totalorder %s75, %s76
      %p88 = scmp.eq.s32.totalorder %s24, 1
      %p89 = por %p87, %p88
      %p91 = scmp.ne.s32.totalorder %s76, %s90
      %p92 = scmp.eq.s32.totalorder %s24, 0
      %p93 = por %p91, %p92
      %s95 = sadd.s32 %s94, 1
      %p98 = scmp.eq.s32.totalorder %s18, 1
      %p99 = scmp.ne.s32.totalorder %s94, %s96
      %p100 = scmp.eq.s32.totalorder %s18, 0
      %p101 = por %p99, %p100
      %p102 = scmp.ne.s32.totalorder %s94, %s96
      %p103 = scmp.eq.s32.totalorder %s23, 1
      %p104 = por %p102, %p103
      %p105 = scmp.ne.s32.totalorder %s96, %s97
      %p106 = scmp.eq.s32.totalorder %s23, 0
      %p107 = por %p105, %p106
      %p108 = scmp.ne.s32.totalorder %s96, %s97
      %p109 = scmp.eq.s32.totalorder %s24, 1
      %p110 = por %p108, %p109
      %p112 = scmp.ne.s32.totalorder %s97, %s111
      %p113 = scmp.eq.s32.totalorder %s24, 0
      %p114 = por %p112, %p113
      %s116 = sadd.s32 %s115, 1
      %p119 = scmp.eq.s32.totalorder %s18, 1
      %p120 = scmp.ne.s32.totalorder %s115, %s117
      %p121 = scmp.eq.s32.totalorder %s18, 0
      %p122 = por %p120, %p121
      %p123 = scmp.ne.s32.totalorder %s115, %s117
      %p124 = scmp.eq.s32.totalorder %s23, 1
      %p125 = por %p123, %p124
      %p126 = scmp.ne.s32.totalorder %s117, %s118
      %p127 = scmp.eq.s32.totalorder %s23, 0
      %p128 = por %p126, %p127
      %p129 = scmp.ne.s32.totalorder %s117, %s118
      %p130 = scmp.eq.s32.totalorder %s24, 1
      %p131 = por %p129, %p130
      %p133 = scmp.ne.s32.totalorder %s118, %s132
      %p134 = scmp.eq.s32.totalorder %s24, 0
      %p135 = por %p133, %p134
      %s136 = ssub.s32 %s18, %s25
      %p137 = scmp.eq.s32.totalorder %s136, 0
      %s139 = sadd.s32 %s138, 1
      %s140 = scalar_select %p137, %s138, %s139
      %p143 = pneg %p137
      %p144 = scmp.eq.s32.totalorder %s18, 1
      %p145 = por %p143, %p144
      %p146 = scmp.ne.s32.totalorder %s138, %s141
      %p147 = scmp.eq.s32.totalorder %s18, 0
      %p148 = por %p146, %p147
      %p149 = scmp.ne.s32.totalorder %s138, %s141
      %p150 = scmp.eq.s32.totalorder %s23, 1
      %p151 = por %p149, %p150
      %p152 = scmp.ne.s32.totalorder %s141, %s142
      %p153 = scmp.eq.s32.totalorder %s23, 0
      %p154 = por %p152, %p153
      %p155 = scmp.ne.s32.totalorder %s141, %s142
      %p156 = scmp.eq.s32.totalorder %s24, 1
      %p157 = por %p155, %p156
      %p159 = scmp.ne.s32.totalorder %s142, %s158
      %p160 = scmp.eq.s32.totalorder %s24, 0
      %p161 = por %p159, %p160
      %p162 = scmp.le.s32.totalorder 1, %s18
      %p163 = scmp.lt.s32.totalorder %s18, 3
      %p164 = pnand %p162, %p163
      %p165 = pneg %p164
      // Predicated region
      $region9: #{tpu_custom_call.1} parent=5 // pred_check
        _
      $region10: #{tpu_custom_call.1} parent=5 // pred_check_branch
        %167 = sbr.rel (%p164) target = $region12
      $region11: #{tpu_custom_call.1} parent=5 // pred_region
        %s168 = ssub.s32 %s18, 1
        // Predicated region
        $region13: #{tpu_custom_call.1} parent=11 // pred_check
          %p169 = pneg %p65
        $region14: #{tpu_custom_call.1} parent=11 // pred_check_branch
          %171 = sbr.rel (%p169) target = $region16
        $region15: #{tpu_custom_call.1} parent=11 // pred_region
          %173 = vsyncadd [#allocation6], 0
          %s174 = sshll.u32 %s1, 4
          %s175 = int_to_ptr.hbm [resolvable:$true] %s174
          %s176 = sshll.u32 [#allocation5], 4
          %s177 = int_to_ptr.vmem [resolvable:$true] %s176
          %182 = dma.hbm_to_vmem [thread:$0]  %s175, 6144, %s177, [#allocation6], 64, 64, 4
        $region16: #{tpu_custom_call.1} parent=11 // pred_fallthru
          _
        // Predicated region
        $region17: #{tpu_custom_call.1} parent=11 // pred_check
          %p183 = pneg %p86
        $region18: #{tpu_custom_call.1} parent=11 // pred_check_branch
          %185 = sbr.rel (%p183) target = $region20
        $region19: #{tpu_custom_call.1} parent=11 // pred_region
          _
        $region20: #{tpu_custom_call.1} parent=11 // pred_fallthru
          _
        // Predicated region
        $region21: #{tpu_custom_call.1} parent=11 // pred_check
          %p186 = pneg %p107
        $region22: #{tpu_custom_call.1} parent=11 // pred_check_branch
          %188 = sbr.rel (%p186) target = $region24
        $region23: #{tpu_custom_call.1} parent=11 // pred_region
          %190 = vsyncadd [#allocation6], 0
          %s191 = sshll.u32 %s3, 4
          %s192 = int_to_ptr.hbm [resolvable:$true] %s191
          %s193 = sshll.u32 [#allocation7], 4
          %s194 = int_to_ptr.vmem [resolvable:$true] %s193
          %199 = dma.hbm_to_vmem [thread:$0]  %s192, 1024, %s194, [#allocation6], 64, 64, 4
        $region24: #{tpu_custom_call.1} parent=11 // pred_fallthru
          _
        // Predicated region
        $region25: #{tpu_custom_call.1} parent=11 // pred_check
          %p200 = pneg %p128
        $region26: #{tpu_custom_call.1} parent=11 // pred_check_branch
          %202 = sbr.rel (%p200) target = $region28
        $region27: #{tpu_custom_call.1} parent=11 // pred_region
          _
        $region28: #{tpu_custom_call.1} parent=11 // pred_fallthru
          _
      $region12: #{tpu_custom_call.1} parent=5 // pred_fallthru
        _
      %p203 = scmp.lt.s32.totalorder %s18, 2
      // Predicated region
      $region29: #{tpu_custom_call.1} parent=5 // pred_check
        %p204 = pneg %p203
      $region30: #{tpu_custom_call.1} parent=5 // pred_check_branch
        %206 = sbr.rel (%p204) target = $region32
      $region31: #{tpu_custom_call.1} parent=5 // pred_region
        // Predicated region
        $region33: #{tpu_custom_call.1} parent=31 // pred_check
          %p207 = pneg %p38
        $region34: #{tpu_custom_call.1} parent=31 // pred_check_branch
          %209 = sbr.rel (%p207) target = $region36
        $region35: #{tpu_custom_call.1} parent=31 // pred_region
          %s210 = sand.u32 %s28, 1
          %s211 = scalar_lea.sflag [#allocation3], %s210
          %s212 = sand.u32 %s28, 1
          %s213 = smul.addr %s212, 48
          %s214 = scalar_lea.vmem [#allocation2], %s213
          %216 = vsyncadd %s211, 0
          %s217 = smul.addr %s18, 6
          %s218 = smul.addr %s217, 8
          %s219 = scalar_lea.hbm %s0, %s218
          %s221 = sshll.u32 %s219, 4
          %s222 = int_to_ptr.hbm [resolvable:$true] %s221
          %s223 = sshll.u32 %s214, 4
          %s224 = int_to_ptr.vmem [resolvable:$true] %s223
          %226 = dma.hbm_to_vmem [thread:$0]  %s222, 768, %s224, %s211
        $region36: #{tpu_custom_call.1} parent=31 // pred_fallthru
          _
      $region32: #{tpu_custom_call.1} parent=5 // pred_fallthru
        _
      %p227 = scmp.le.s32.totalorder 1, %s18
      %p228 = scmp.lt.s32.totalorder %s18, 3
      %p229 = pnand %p227, %p228
      %p230 = pneg %p229
      // Predicated region
      $region37: #{tpu_custom_call.1} parent=5 // pred_check
        _
      $region38: #{tpu_custom_call.1} parent=5 // pred_check_branch
        %232 = sbr.rel (%p229) target = $region40
      $region39: #{tpu_custom_call.1} parent=5 // pred_region
        %s233 = ssub.s32 %s18, 1
        %s234 = sand.u32 %s31, 1
        %s235 = scalar_lea.sflag [#allocation3], %s234
        %s236 = sand.u32 %s31, 1
        %s237 = smul.addr %s236, 48
        %s238 = scalar_lea.vmem [#allocation2], %s237
        // Predicated region
        $region41: #{tpu_custom_call.1} parent=39 // pred_check
          %p239 = pneg %p44
        $region42: #{tpu_custom_call.1} parent=39 // pred_check_branch
          %241 = sbr.rel (%p239) target = $region44
        $region43: #{tpu_custom_call.1} parent=39 // pred_region
          %243 = dma.done %s235, 768
        $region44: #{tpu_custom_call.1} parent=39 // pred_fallthru
          _
        // Predicated region
        $region45: #{tpu_custom_call.1} parent=39 // pred_check
          %p244 = pneg %p65
        $region46: #{tpu_custom_call.1} parent=39 // pred_check_branch
          %246 = sbr.rel (%p244) target = $region48
        $region47: #{tpu_custom_call.1} parent=39 // pred_region
          %248 = dma.done [#allocation6], 6144
        $region48: #{tpu_custom_call.1} parent=39 // pred_fallthru
          _
        // Predicated region
        $region49: #{tpu_custom_call.1} parent=39 // pred_check
          %p249 = pneg %p107
        $region50: #{tpu_custom_call.1} parent=39 // pred_check_branch
          %251 = sbr.rel (%p249) target = $region52
        $region51: #{tpu_custom_call.1} parent=39 // pred_region
          %253 = dma.done [#allocation6], 1024
        $region52: #{tpu_custom_call.1} parent=39 // pred_fallthru
          _
        %s254 = sand.u32 %s31, 1
        %s255 = scalar_lea.sflag [#allocation3], %s254
        %s256 = sand.u32 %s31, 1
        %s257 = smul.addr %s256, 48
        %s258 = scalar_lea.vmem [#allocation2], %s257
        %p259 = pneg %p44
        %p260 = pneg %p41
        %p261 = pneg %p65
        %p262 = pneg %p62
        %p263 = pneg %p86
        %p264 = pneg %p83
        %p265 = pneg %p107
        %p266 = pneg %p104
        %p267 = pneg %p128
        %p268 = pneg %p125
        %p269 = pneg %p154
        %p270 = pneg %p151
        %s271 = sand.u32 %s141, 1
        %s272 = scalar_lea.sflag [#allocation4], %s271
        %s273 = sand.u32 %s141, 1
        %s274 = smul.addr %s273, 8
        %s275 = scalar_lea.vmem [#allocation8], %s274
        %v276 = vld [vmem:[%s238] sm:$0xff]
        %v277 = vld [vmem:[%s238 + $0x8] sm:$0xff]
        %v278 = vld [vmem:[%s238 + $0x10] sm:$0xff]
        %v279 = vld [vmem:[%s238 + $0x18] sm:$0xff]
        %v280 = vld [vmem:[%s238 + $0x20] sm:$0xff]
        %v281 = vld [vmem:[%s238 + $0x28] sm:$0xff]
        %v282 = vpack.c.bf16 %v276, %v276
        %v283 = vpack.c.bf16 %v277, %v277
        %v284 = vpack.c.bf16 %v278, %v278
        %v285 = vpack.c.bf16 %v279, %v279
        %v286 = vpack.c.bf16 %v280, %v280
        %v287 = vpack.c.bf16 %v281, %v281
        %v288 = vld [vmem:[#allocation5] sm:$0xf]
        %v289 = vld [vmem:[#allocation5 + $0x4] sm:$0xf]
        %v290 = vld [vmem:[#allocation5 + $0x8] sm:$0xf]
        %v291 = vld [vmem:[#allocation5 + $0xc] sm:$0xf]
        %v292 = vld [vmem:[#allocation5 + $0x10] sm:$0xf]
        %v293 = vld [vmem:[#allocation5 + $0x14] sm:$0xf]
        %v294 = vld [vmem:[#allocation5 + $0x18] sm:$0xf]
        %v295 = vld [vmem:[#allocation5 + $0x1c] sm:$0xf]
        %v296 = vld [vmem:[#allocation5 + $0x20] sm:$0xf]
        %v297 = vld [vmem:[#allocation5 + $0x24] sm:$0xf]
        %v298 = vld [vmem:[#allocation5 + $0x28] sm:$0xf]
        %v299 = vld [vmem:[#allocation5 + $0x2c] sm:$0xf]
        %v300 = vld [vmem:[#allocation5 + $0x30] sm:$0xf]
        %v301 = vld [vmem:[#allocation5 + $0x34] sm:$0xf]
        %v302 = vld [vmem:[#allocation5 + $0x38] sm:$0xf]
        %v303 = vld [vmem:[#allocation5 + $0x3c] sm:$0xf]
        %v304 = vld [vmem:[#allocation5 + $0x40] sm:$0xf]
        %v305 = vld [vmem:[#allocation5 + $0x44] sm:$0xf]
        %v306 = vld [vmem:[#allocation5 + $0x48] sm:$0xf]
        %v307 = vld [vmem:[#allocation5 + $0x4c] sm:$0xf]
        %v308 = vld [vmem:[#allocation5 + $0x50] sm:$0xf]
        %v309 = vld [vmem:[#allocation5 + $0x54] sm:$0xf]
        %v310 = vld [vmem:[#allocation5 + $0x58] sm:$0xf]
        %v311 = vld [vmem:[#allocation5 + $0x5c] sm:$0xf]
        %v312 = vld [vmem:[#allocation5 + $0x60] sm:$0xf]
        %v313 = vld [vmem:[#allocation5 + $0x64] sm:$0xf]
        %v314 = vld [vmem:[#allocation5 + $0x68] sm:$0xf]
        %v315 = vld [vmem:[#allocation5 + $0x6c] sm:$0xf]
        %v316 = vld [vmem:[#allocation5 + $0x70] sm:$0xf]
        %v317 = vld [vmem:[#allocation5 + $0x74] sm:$0xf]
        %v318 = vld [vmem:[#allocation5 + $0x78] sm:$0xf]
        %v319 = vld [vmem:[#allocation5 + $0x7c] sm:$0xf]
        %v320 = vld [vmem:[#allocation5 + $0x80] sm:$0xf]
        %v321 = vld [vmem:[#allocation5 + $0x84] sm:$0xf]
        %v322 = vld [vmem:[#allocation5 + $0x88] sm:$0xf]
        %v323 = vld [vmem:[#allocation5 + $0x8c] sm:$0xf]
        %v324 = vld [vmem:[#allocation5 + $0x90] sm:$0xf]
        %v325 = vld [vmem:[#allocation5 + $0x94] sm:$0xf]
        %v326 = vld [vmem:[#allocation5 + $0x98] sm:$0xf]
        %v327 = vld [vmem:[#allocation5 + $0x9c] sm:$0xf]
        %v328 = vld [vmem:[#allocation5 + $0xa0] sm:$0xf]
        %v329 = vld [vmem:[#allocation5 + $0xa4] sm:$0xf]
        %v330 = vld [vmem:[#allocation5 + $0xa8] sm:$0xf]
        %v331 = vld [vmem:[#allocation5 + $0xac] sm:$0xf]
        %v332 = vld [vmem:[#allocation5 + $0xb0] sm:$0xf]
        %v333 = vld [vmem:[#allocation5 + $0xb4] sm:$0xf]
        %v334 = vld [vmem:[#allocation5 + $0xb8] sm:$0xf]
        %v335 = vld [vmem:[#allocation5 + $0xbc] sm:$0xf]
        %v336 = vld [vmem:[#allocation5 + $0xc0] sm:$0xf]
        %v337 = vld [vmem:[#allocation5 + $0xc4] sm:$0xf]
        %v338 = vld [vmem:[#allocation5 + $0xc8] sm:$0xf]
        %v339 = vld [vmem:[#allocation5 + $0xcc] sm:$0xf]
        %v340 = vld [vmem:[#allocation5 + $0xd0] sm:$0xf]
        %v341 = vld [vmem:[#allocation5 + $0xd4] sm:$0xf]
        %v342 = vld [vmem:[#allocation5 + $0xd8] sm:$0xf]
        %v343 = vld [vmem:[#allocation5 + $0xdc] sm:$0xf]
        %v344 = vld [vmem:[#allocation5 + $0xe0] sm:$0xf]
        %v345 = vld [vmem:[#allocation5 + $0xe4] sm:$0xf]
        %v346 = vld [vmem:[#allocation5 + $0xe8] sm:$0xf]
        %v347 = vld [vmem:[#allocation5 + $0xec] sm:$0xf]
        %v348 = vld [vmem:[#allocation5 + $0xf0] sm:$0xf]
        %v349 = vld [vmem:[#allocation5 + $0xf4] sm:$0xf]
        %v350 = vld [vmem:[#allocation5 + $0xf8] sm:$0xf]
        %v351 = vld [vmem:[#allocation5 + $0xfc] sm:$0xf]
        %v352 = vld [vmem:[#allocation5 + $0x100] sm:$0xf]
        %v353 = vld [vmem:[#allocation5 + $0x104] sm:$0xf]
        %v354 = vld [vmem:[#allocation5 + $0x108] sm:$0xf]
        %v355 = vld [vmem:[#allocation5 + $0x10c] sm:$0xf]
        %v356 = vld [vmem:[#allocation5 + $0x110] sm:$0xf]
        %v357 = vld [vmem:[#allocation5 + $0x114] sm:$0xf]
        %v358 = vld [vmem:[#allocation5 + $0x118] sm:$0xf]
        %v359 = vld [vmem:[#allocation5 + $0x11c] sm:$0xf]
        %v360 = vld [vmem:[#allocation5 + $0x120] sm:$0xf]
        %v361 = vld [vmem:[#allocation5 + $0x124] sm:$0xf]
        %v362 = vld [vmem:[#allocation5 + $0x128] sm:$0xf]
        %v363 = vld [vmem:[#allocation5 + $0x12c] sm:$0xf]
        %v364 = vld [vmem:[#allocation5 + $0x130] sm:$0xf]
        %v365 = vld [vmem:[#allocation5 + $0x134] sm:$0xf]
        %v366 = vld [vmem:[#allocation5 + $0x138] sm:$0xf]
        %v367 = vld [vmem:[#allocation5 + $0x13c] sm:$0xf]
        %v368 = vld [vmem:[#allocation5 + $0x140] sm:$0xf]
        %v369 = vld [vmem:[#allocation5 + $0x144] sm:$0xf]
        %v370 = vld [vmem:[#allocation5 + $0x148] sm:$0xf]
        %v371 = vld [vmem:[#allocation5 + $0x14c] sm:$0xf]
        %v372 = vld [vmem:[#allocation5 + $0x150] sm:$0xf]
        %v373 = vld [vmem:[#allocation5 + $0x154] sm:$0xf]
        %v374 = vld [vmem:[#allocation5 + $0x158] sm:$0xf]
        %v375 = vld [vmem:[#allocation5 + $0x15c] sm:$0xf]
        %v376 = vld [vmem:[#allocation5 + $0x160] sm:$0xf]
        %v377 = vld [vmem:[#allocation5 + $0x164] sm:$0xf]
        %v378 = vld [vmem:[#allocation5 + $0x168] sm:$0xf]
        %v379 = vld [vmem:[#allocation5 + $0x16c] sm:$0xf]
        %v380 = vld [vmem:[#allocation5 + $0x170] sm:$0xf]
        %v381 = vld [vmem:[#allocation5 + $0x174] sm:$0xf]
        %v382 = vld [vmem:[#allocation5 + $0x178] sm:$0xf]
        %v383 = vld [vmem:[#allocation5 + $0x17c] sm:$0xf]
        %v384 = vld [vmem:[%s2] sm:$0x1]
        %v386 = vperm.slane %v384, 0
        %v484 = vunpack.c.l.b16 %v288
        %v485 = vunpack.c.l.b16 %v289
        %v486 = vunpack.c.l.b16 %v290
        %v487 = vunpack.c.l.b16 %v291
        %v488 = vunpack.c.l.b16 %v292
        %v489 = vunpack.c.l.b16 %v293
        %v490 = vunpack.c.l.b16 %v294
        %v491 = vunpack.c.l.b16 %v295
        %v492 = vunpack.c.l.b16 %v296
        %v493 = vunpack.c.l.b16 %v297
        %v494 = vunpack.c.l.b16 %v298
        %v495 = vunpack.c.l.b16 %v299
        %v496 = vunpack.c.l.b16 %v300
        %v497 = vunpack.c.l.b16 %v301
        %v498 = vunpack.c.l.b16 %v302
        %v499 = vunpack.c.l.b16 %v303
        %v500 = vunpack.c.l.b16 %v304
        %v501 = vunpack.c.l.b16 %v305
        %v502 = vunpack.c.l.b16 %v306
        %v503 = vunpack.c.l.b16 %v307
        %v504 = vunpack.c.l.b16 %v308
        %v505 = vunpack.c.l.b16 %v309
        %v506 = vunpack.c.l.b16 %v310
        %v507 = vunpack.c.l.b16 %v311
        %v508 = vunpack.c.l.b16 %v312
        %v509 = vunpack.c.l.b16 %v313
        %v510 = vunpack.c.l.b16 %v314
        %v511 = vunpack.c.l.b16 %v315
        %v512 = vunpack.c.l.b16 %v316
        %v513 = vunpack.c.l.b16 %v317
        %v514 = vunpack.c.l.b16 %v318
        %v515 = vunpack.c.l.b16 %v319
        %v516 = vunpack.c.l.b16 %v320
        %v517 = vunpack.c.l.b16 %v321
        %v518 = vunpack.c.l.b16 %v322
        %v519 = vunpack.c.l.b16 %v323
        %v520 = vunpack.c.l.b16 %v324
        %v521 = vunpack.c.l.b16 %v325
        %v522 = vunpack.c.l.b16 %v326
        %v523 = vunpack.c.l.b16 %v327
        %v524 = vunpack.c.l.b16 %v328
        %v525 = vunpack.c.l.b16 %v329
        %v526 = vunpack.c.l.b16 %v330
        %v527 = vunpack.c.l.b16 %v331
        %v528 = vunpack.c.l.b16 %v332
        %v529 = vunpack.c.l.b16 %v333
        %v530 = vunpack.c.l.b16 %v334
        %v531 = vunpack.c.l.b16 %v335
        %v532 = vunpack.c.l.b16 %v336
        %v533 = vunpack.c.l.b16 %v337
        %v534 = vunpack.c.l.b16 %v338
        %v535 = vunpack.c.l.b16 %v339
        %v536 = vunpack.c.l.b16 %v340
        %v537 = vunpack.c.l.b16 %v341
        %v538 = vunpack.c.l.b16 %v342
        %v539 = vunpack.c.l.b16 %v343
        %v540 = vunpack.c.l.b16 %v344
        %v541 = vunpack.c.l.b16 %v345
        %v542 = vunpack.c.l.b16 %v346
        %v543 = vunpack.c.l.b16 %v347
        %v544 = vunpack.c.l.b16 %v348
        %v545 = vunpack.c.l.b16 %v349
        %v546 = vunpack.c.l.b16 %v350
        %v547 = vunpack.c.l.b16 %v351
        %v548 = vunpack.c.l.b16 %v352
        %v549 = vunpack.c.l.b16 %v353
        %v550 = vunpack.c.l.b16 %v354
        %v551 = vunpack.c.l.b16 %v355
        %v552 = vunpack.c.l.b16 %v356
        %v553 = vunpack.c.l.b16 %v357
        %v554 = vunpack.c.l.b16 %v358
        %v555 = vunpack.c.l.b16 %v359
        %v556 = vunpack.c.l.b16 %v360
        %v557 = vunpack.c.l.b16 %v361
        %v558 = vunpack.c.l.b16 %v362
        %v559 = vunpack.c.l.b16 %v363
        %v560 = vunpack.c.l.b16 %v364
        %v561 = vunpack.c.l.b16 %v365
        %v562 = vunpack.c.l.b16 %v366
        %v563 = vunpack.c.l.b16 %v367
        %v564 = vunpack.c.l.b16 %v368
        %v565 = vunpack.c.l.b16 %v369
        %v566 = vunpack.c.l.b16 %v370
        %v567 = vunpack.c.l.b16 %v371
        %v568 = vunpack.c.l.b16 %v372
        %v569 = vunpack.c.l.b16 %v373
        %v570 = vunpack.c.l.b16 %v374
        %v571 = vunpack.c.l.b16 %v375
        %v572 = vunpack.c.l.b16 %v376
        %v573 = vunpack.c.l.b16 %v377
        %v574 = vunpack.c.l.b16 %v378
        %v575 = vunpack.c.l.b16 %v379
        %v576 = vunpack.c.l.b16 %v380
        %v577 = vunpack.c.l.b16 %v381
        %v578 = vunpack.c.l.b16 %v382
        %v579 = vunpack.c.l.b16 %v383
        %v580 = vpack.c.b16 %v485, %v484
        %v581 = vpack.c.b16 %v487, %v486
        %v582 = vpack.c.b16 %v489, %v488
        %v583 = vpack.c.b16 %v491, %v490
        %v584 = vpack.c.b16 %v493, %v492
        %v585 = vpack.c.b16 %v495, %v494
        %v586 = vpack.c.b16 %v497, %v496
        %v587 = vpack.c.b16 %v499, %v498
        %v588 = vpack.c.b16 %v501, %v500
        %v589 = vpack.c.b16 %v503, %v502
        %v590 = vpack.c.b16 %v505, %v504
        %v591 = vpack.c.b16 %v507, %v506
        %v592 = vpack.c.b16 %v509, %v508
        %v593 = vpack.c.b16 %v511, %v510
        %v594 = vpack.c.b16 %v513, %v512
        %v595 = vpack.c.b16 %v515, %v514
        %v596 = vpack.c.b16 %v517, %v516
        %v597 = vpack.c.b16 %v519, %v518
        %v598 = vpack.c.b16 %v521, %v520
        %v599 = vpack.c.b16 %v523, %v522
        %v600 = vpack.c.b16 %v525, %v524
        %v601 = vpack.c.b16 %v527, %v526
        %v602 = vpack.c.b16 %v529, %v528
        %v603 = vpack.c.b16 %v531, %v530
        %v604 = vpack.c.b16 %v533, %v532
        %v605 = vpack.c.b16 %v535, %v534
        %v606 = vpack.c.b16 %v537, %v536
        %v607 = vpack.c.b16 %v539, %v538
        %v608 = vpack.c.b16 %v541, %v540
        %v609 = vpack.c.b16 %v543, %v542
        %v610 = vpack.c.b16 %v545, %v544
        %v611 = vpack.c.b16 %v547, %v546
        %v612 = vpack.c.b16 %v549, %v548
        %v613 = vpack.c.b16 %v551, %v550
        %v614 = vpack.c.b16 %v553, %v552
        %v615 = vpack.c.b16 %v555, %v554
        %v616 = vpack.c.b16 %v557, %v556
        %v617 = vpack.c.b16 %v559, %v558
        %v618 = vpack.c.b16 %v561, %v560
        %v619 = vpack.c.b16 %v563, %v562
        %v620 = vpack.c.b16 %v565, %v564
        %v621 = vpack.c.b16 %v567, %v566
        %v622 = vpack.c.b16 %v569, %v568
        %v623 = vpack.c.b16 %v571, %v570
        %v624 = vpack.c.b16 %v573, %v572
        %v625 = vpack.c.b16 %v575, %v574
        %v626 = vpack.c.b16 %v577, %v576
        %v627 = vpack.c.b16 %v579, %v578
        %676 = vmatpush.bf16.msra.mxu0 %v587
        %677 = vmatpush.bf16.msra.mxu0 %v586
        %678 = vmatpush.bf16.msra.mxu0 %v585
        %679 = vmatpush.bf16.msra.mxu0 %v584
        %680 = vmatpush.bf16.msra.mxu0 %v583
        %681 = vmatpush.bf16.msra.mxu0 %v582
        %682 = vmatpush.bf16.msra.mxu0 %v581
        %683 = vmatpush.bf16.msra.mxu0 %v580
        %684 = vmatmul.bf16.gmra.mxu0 %v282
        %v685 = vpop.f32.mrf.mxu0
        %v686 = vadd.f32 %v386, %v685
        %v687 = vpop.f32.mrf.mxu0
        %688 = vdwg.mxu0
        %689 = vmatpush.bf16.msra.mxu0 %v595
        %690 = vmatpush.bf16.msra.mxu0 %v594
        %691 = vmatpush.bf16.msra.mxu0 %v593
        %692 = vmatpush.bf16.msra.mxu0 %v592
        %693 = vmatpush.bf16.msra.mxu0 %v591
        %694 = vmatpush.bf16.msra.mxu0 %v590
        %695 = vmatpush.bf16.msra.mxu0 %v589
        %696 = vmatpush.bf16.msra.mxu0 %v588
        %697 = vmatmul.bf16.gmra.mxu0 %v283
        %v698 = vpop.f32.mrf.mxu0
        %v699 = vadd.f32 %v686, %v698
        %v700 = vpop.f32.mrf.mxu0
        %701 = vdwg.mxu0
        %702 = vmatpush.bf16.msra.mxu0 %v603
        %703 = vmatpush.bf16.msra.mxu0 %v602
        %704 = vmatpush.bf16.msra.mxu0 %v601
        %705 = vmatpush.bf16.msra.mxu0 %v600
        %706 = vmatpush.bf16.msra.mxu0 %v599
        %707 = vmatpush.bf16.msra.mxu0 %v598
        %708 = vmatpush.bf16.msra.mxu0 %v597
        %709 = vmatpush.bf16.msra.mxu0 %v596
        %710 = vmatmul.bf16.gmra.mxu0 %v284
        %v711 = vpop.f32.mrf.mxu0
        %v712 = vadd.f32 %v699, %v711
        %v713 = vpop.f32.mrf.mxu0
        %714 = vdwg.mxu0
        %715 = vmatpush.bf16.msra.mxu0 %v611
        %716 = vmatpush.bf16.msra.mxu0 %v610
        %717 = vmatpush.bf16.msra.mxu0 %v609
        %718 = vmatpush.bf16.msra.mxu0 %v608
        %719 = vmatpush.bf16.msra.mxu0 %v607
        %720 = vmatpush.bf16.msra.mxu0 %v606
        %721 = vmatpush.bf16.msra.mxu0 %v605
        %722 = vmatpush.bf16.msra.mxu0 %v604
        %723 = vmatmul.bf16.gmra.mxu0 %v285
        %v724 = vpop.f32.mrf.mxu0
        %v725 = vadd.f32 %v712, %v724
        %v726 = vpop.f32.mrf.mxu0
        %727 = vdwg.mxu0
        %728 = vmatpush.bf16.msra.mxu0 %v619
        %729 = vmatpush.bf16.msra.mxu0 %v618
        %730 = vmatpush.bf16.msra.mxu0 %v617
        %731 = vmatpush.bf16.msra.mxu0 %v616
        %732 = vmatpush.bf16.msra.mxu0 %v615
        %733 = vmatpush.bf16.msra.mxu0 %v614
        %734 = vmatpush.bf16.msra.mxu0 %v613
        %735 = vmatpush.bf16.msra.mxu0 %v612
        %736 = vmatmul.bf16.gmra.mxu0 %v286
        %v737 = vpop.f32.mrf.mxu0
        %v738 = vadd.f32 %v725, %v737
        %v739 = vpop.f32.mrf.mxu0
        %740 = vdwg.mxu0
        %741 = vmatpush.bf16.msra.mxu0 %v627
        %742 = vmatpush.bf16.msra.mxu0 %v626
        %743 = vmatpush.bf16.msra.mxu0 %v625
        %744 = vmatpush.bf16.msra.mxu0 %v624
        %745 = vmatpush.bf16.msra.mxu0 %v623
        %746 = vmatpush.bf16.msra.mxu0 %v622
        %747 = vmatpush.bf16.msra.mxu0 %v621
        %748 = vmatpush.bf16.msra.mxu0 %v620
        %749 = vmatmul.bf16.gmra.mxu0 %v287
        %v750 = vpop.f32.mrf.mxu0
        %v751 = vadd.f32 %v738, %v750
        %v752 = vpop.f32.mrf.mxu0
        %753 = vdwg.mxu0
        %v754 = vmax.f32 %v751, 0.0
        %v755 = vpack.c.bf16 %v754, %v754
        %v756 = vld [vmem:[#allocation7] sm:$0xf]
        %v757 = vld [vmem:[#allocation7 + $0x4] sm:$0xf]
        %v758 = vld [vmem:[#allocation7 + $0x8] sm:$0xf]
        %v759 = vld [vmem:[#allocation7 + $0xc] sm:$0xf]
        %v760 = vld [vmem:[#allocation7 + $0x10] sm:$0xf]
        %v761 = vld [vmem:[#allocation7 + $0x14] sm:$0xf]
        %v762 = vld [vmem:[#allocation7 + $0x18] sm:$0xf]
        %v763 = vld [vmem:[#allocation7 + $0x1c] sm:$0xf]
        %v764 = vld [vmem:[#allocation7 + $0x20] sm:$0xf]
        %v765 = vld [vmem:[#allocation7 + $0x24] sm:$0xf]
        %v766 = vld [vmem:[#allocation7 + $0x28] sm:$0xf]
        %v767 = vld [vmem:[#allocation7 + $0x2c] sm:$0xf]
        %v768 = vld [vmem:[#allocation7 + $0x30] sm:$0xf]
        %v769 = vld [vmem:[#allocation7 + $0x34] sm:$0xf]
        %v770 = vld [vmem:[#allocation7 + $0x38] sm:$0xf]
        %v771 = vld [vmem:[#allocation7 + $0x3c] sm:$0xf]
        %v772 = vld [vmem:[%s4] sm:$0x1]
        %v774 = vperm.slane %v772, 0
        %v792 = vunpack.c.l.b16 %v756
        %v793 = vunpack.c.l.b16 %v757
        %v794 = vunpack.c.l.b16 %v758
        %v795 = vunpack.c.l.b16 %v759
        %v796 = vunpack.c.l.b16 %v760
        %v797 = vunpack.c.l.b16 %v761
        %v798 = vunpack.c.l.b16 %v762
        %v799 = vunpack.c.l.b16 %v763
        %v800 = vunpack.c.l.b16 %v764
        %v801 = vunpack.c.l.b16 %v765
        %v802 = vunpack.c.l.b16 %v766
        %v803 = vunpack.c.l.b16 %v767
        %v804 = vunpack.c.l.b16 %v768
        %v805 = vunpack.c.l.b16 %v769
        %v806 = vunpack.c.l.b16 %v770
        %v807 = vunpack.c.l.b16 %v771
        %v808 = vpack.c.b16 %v793, %v792
        %v809 = vpack.c.b16 %v795, %v794
        %v810 = vpack.c.b16 %v797, %v796
        %v811 = vpack.c.b16 %v799, %v798
        %v812 = vpack.c.b16 %v801, %v800
        %v813 = vpack.c.b16 %v803, %v802
        %v814 = vpack.c.b16 %v805, %v804
        %v815 = vpack.c.b16 %v807, %v806
        %824 = vmatpush.bf16.msra.mxu0 %v815
        %825 = vmatpush.bf16.msra.mxu0 %v814
        %826 = vmatpush.bf16.msra.mxu0 %v813
        %827 = vmatpush.bf16.msra.mxu0 %v812
        %828 = vmatpush.bf16.msra.mxu0 %v811
        %829 = vmatpush.bf16.msra.mxu0 %v810
        %830 = vmatpush.bf16.msra.mxu0 %v809
        %831 = vmatpush.bf16.msra.mxu0 %v808
        %832 = vmatmul.bf16.gmra.mxu0 %v755
        %v833 = vpop.f32.mrf.mxu0
        %v834 = vadd.f32 %v774, %v833
        %v835 = vpop.f32.mrf.mxu0
        %836 = vdwg.mxu0
        %v837 = vmax.f32 %v834, 0.0
        %838 = vst [vmem:[%s275] sm:$0xff] %v837
        %s839 = sand.u32 %s141, 1
        %s840 = scalar_lea.sflag [#allocation4], %s839
        %s841 = sand.u32 %s141, 1
        %s842 = smul.addr %s841, 8
        %s843 = scalar_lea.vmem [#allocation8], %s842
        // Predicated region
        $region53: #{tpu_custom_call.1} parent=39 // pred_check
          %p844 = pneg %p151
        $region54: #{tpu_custom_call.1} parent=39 // pred_check_branch
          %846 = sbr.rel (%p844) target = $region56
        $region55: #{tpu_custom_call.1} parent=39 // pred_region
          %848 = vsyncadd %s840, 0
          %s849 = smul.addr %s23, 8
          %s850 = scalar_lea.hbm %s5, %s849
          %s852 = sshll.u32 %s843, 4
          %s853 = int_to_ptr.vmem [resolvable:$true] %s852
          %s854 = sshll.u32 %s850, 4
          %s855 = int_to_ptr.hbm [resolvable:$true] %s854
          %857 = dma.vmem_to_hbm [thread:$0]  %s853, 128, %s855, %s840
        $region56: #{tpu_custom_call.1} parent=39 // pred_fallthru
          _
      $region40: #{tpu_custom_call.1} parent=5 // pred_fallthru
        _
      %p858 = scmp.le.s32.totalorder 2, %s18
      // Predicated region
      $region57: #{tpu_custom_call.1} parent=5 // pred_check
        %p859 = pneg %p858
      $region58: #{tpu_custom_call.1} parent=5 // pred_check_branch
        %861 = sbr.rel (%p859) target = $region60
      $region59: #{tpu_custom_call.1} parent=5 // pred_region
        %s862 = ssub.s32 %s18, 2
        // Predicated region
        $region61: #{tpu_custom_call.1} parent=59 // pred_check
          %p863 = pneg %p157
        $region62: #{tpu_custom_call.1} parent=59 // pred_check_branch
          %865 = sbr.rel (%p863) target = $region64
        $region63: #{tpu_custom_call.1} parent=59 // pred_region
          %s866 = sand.u32 %s142, 1
          %s867 = scalar_lea.sflag [#allocation4], %s866
          %s868 = sand.u32 %s142, 1
          %s869 = smul.addr %s868, 8
          %s870 = scalar_lea.vmem [#allocation8], %s869
          %872 = dma.done %s867, 128
        $region64: #{tpu_custom_call.1} parent=59 // pred_fallthru
          _
      $region60: #{tpu_custom_call.1} parent=5 // pred_fallthru
        _
    $region6: #{tpu_custom_call.1} parent=1 // loop_footer
      %s22 = sadd.s32 1, %s18
    $region7: #{tpu_custom_call.1} parent=1 // loop_footer_branch
      %17 = sbr.rel target = $region3
    $region8: #{tpu_custom_call.1} parent=1 // loop_exit
      _
    %873 = vsyncpa [#allocation3], 1
    %s874 = scalar_lea.sflag [#allocation3], 1
    %875 = vsyncpa %s874, 1
    %876 = vsyncpa [#allocation6], 1
    %877 = vsyncpa [#allocation4], 1
    %s878 = scalar_lea.sflag [#allocation4], 1
    %879 = vsyncpa %s878, 1

// kernel: tpu_custom_call.1
$region0: #{tpu_custom_call.1}
  #allocation0 [shape = 'u32[]', space=smem, size = 0x4, offset = 0x4, fixed_abs, tag = 'smem constant byte address 0x4 - core index']
  #allocation1 [shape = 'u32[72,128]{1,0:T(1,128)}', space=vmem, size = 0x9000, scoped, tag = 'internal scratch']
  %s0 = inlined_call_operand.hbm [shape: f32[16,768], index: 0, kind: input, shape index: {}]
  %s1 = inlined_call_operand.hbm [shape: bf16[768,128], index: 1, kind: input, shape index: {}]
  %s2 = inlined_call_operand.vmem [shape: f32[1,128], index: 2, kind: input, shape index: {}]
  %s3 = inlined_call_operand.hbm [shape: bf16[128,128], index: 3, kind: input, shape index: {}]
  %s4 = inlined_call_operand.vmem [shape: f32[1,128], index: 4, kind: input, shape index: {}]
  %s5 = inlined_call_operand.hbm [shape: f32[16,128], index: 5, kind: output, shape index: {}]
  %s6 = sld [smem:[#allocation0]]
  $region65: #{tpu_custom_call.1} parent=0
    _
  %s8 = ssub.s32 1, %s6
  %s9 = scalar_select 0, %s8, %s6
  $region1: #{tpu_custom_call.1} parent=0
    #allocation2 [shape = 'u8[49152]{0}', space=vmem, size = 0xc000, scoped, tag = 'input window, operand 0']
    #allocation3 [shape = 's32[2]{0}', space=sflag, size = 0x8, scoped, tag = 'scoped memory for tpu_custom_call.1']
    #allocation4 [shape = 's32[2]{0}', space=sflag, size = 0x8, scoped, tag = 'scoped memory for tpu_custom_call.1']
    #allocation5 [shape = 'u8[196608]{0}', space=vmem, size = 0x30000, scoped, tag = 'input window, operand 1, single buffered']
    #allocation6 [shape = 's32[1]{0}', space=sflag, size = 0x4, scoped, tag = 'scoped memory for tpu_custom_call.1']
    #allocation7 [shape = 'u8[32768]{0}', space=vmem, size = 0x8000, scoped, tag = 'input window, operand 3, single buffered']
    #allocation8 [shape = 'u8[8192]{0}', space=vmem, size = 0x2000, scoped, tag = 'output window, operand 0']
    %10 = vsyncpa [#allocation3], 0
    %s11 = scalar_lea.sflag [#allocation3], 1
    %12 = vsyncpa %s11, 0
    %13 = vsyncpa [#allocation6], 0
    %14 = vsyncpa [#allocation4], 0
    %s15 = scalar_lea.sflag [#allocation4], 1
    %16 = vsyncpa %s15, 0
    loop: start=0, step=1, limit=4
    $region2: #{tpu_custom_call.1} parent=1 // loop_pre_header
      _
    $region3: #{tpu_custom_call.1} parent=1 // loop_header
      %s18 = sphi 0, %s22
      %p19 = scmp.ge.s32.totalorder %s18, 4
      %s28 = sphi 0, %s30
      %s31 = sphi 0, %s28
      %s32 = sphi 0, %s31
      %s48 = sphi 0, %s32
      %s52 = sphi 0, %s52
      %s54 = sphi 0, %s52
      %s55 = sphi 0, %s54
      %s69 = sphi 0, %s55
      %s73 = sphi 0, %s73
      %s75 = sphi 0, %s73
      %s76 = sphi 0, %s75
      %s90 = sphi 0, %s76
      %s94 = sphi 0, %s94
      %s96 = sphi 0, %s94
      %s97 = sphi 0, %s96
      %s111 = sphi 0, %s97
      %s115 = sphi 0, %s115
      %s117 = sphi 0, %s115
      %s118 = sphi 0, %s117
      %s132 = sphi 0, %s118
      %s138 = sphi 0, %s140
      %s141 = sphi 0, %s138
      %s142 = sphi 0, %s141
      %s158 = sphi 0, %s142
    $region4: #{tpu_custom_call.1} parent=1 // loop_header_branch
      %21 = sbr.rel (%p19) target = $region8
    $region5: #{tpu_custom_call.1} parent=1 // loop_body
      %s23 = ssub.s32 %s18, 1
      %s24 = ssub.s32 %s18, 2
      %s25 = sadd.s32 %s18, 1
      %s26 = ssub.s32 %s18, %s25
      %p27 = scmp.eq.s32.totalorder %s26, 0
      %s29 = sadd.s32 %s28, 1
      %s30 = scalar_select %p27, %s28, %s29
      %p33 = pneg %p27
      %p34 = scmp.eq.s32.totalorder %s18, 1
      %p35 = por %p33, %p34
      %p36 = scmp.ne.s32.totalorder %s28, %s31
      %p37 = scmp.eq.s32.totalorder %s18, 0
      %p38 = por %p36, %p37
      %p39 = scmp.ne.s32.totalorder %s28, %s31
      %p40 = scmp.eq.s32.totalorder %s23, 1
      %p41 = por %p39, %p40
      %p42 = scmp.ne.s32.totalorder %s31, %s32
      %p43 = scmp.eq.s32.totalorder %s23, 0
      %p44 = por %p42, %p43
      %p45 = scmp.ne.s32.totalorder %s31, %s32
      %p46 = scmp.eq.s32.totalorder %s24, 1
      %p47 = por %p45, %p46
      %p49 = scmp.ne.s32.totalorder %s32, %s48
      %p50 = scmp.eq.s32.totalorder %s24, 0
      %p51 = por %p49, %p50
      %s53 = sadd.s32 %s52, 1
      %p56 = scmp.eq.s32.totalorder %s18, 1
      %p57 = scmp.ne.s32.totalorder %s52, %s54
      %p58 = scmp.eq.s32.totalorder %s18, 0
      %p59 = por %p57, %p58
      %p60 = scmp.ne.s32.totalorder %s52, %s54
      %p61 = scmp.eq.s32.totalorder %s23, 1
      %p62 = por %p60, %p61
      %p63 = scmp.ne.s32.totalorder %s54, %s55
      %p64 = scmp.eq.s32.totalorder %s23, 0
      %p65 = por %p63, %p64
      %p66 = scmp.ne.s32.totalorder %s54, %s55
      %p67 = scmp.eq.s32.totalorder %s24, 1
      %p68 = por %p66, %p67
      %p70 = scmp.ne.s32.totalorder %s55, %s69
      %p71 = scmp.eq.s32.totalorder %s24, 0
      %p72 = por %p70, %p71
      %s74 = sadd.s32 %s73, 1
      %p77 = scmp.eq.s32.totalorder %s18, 1
      %p78 = scmp.ne.s32.totalorder %s73, %s75
      %p79 = scmp.eq.s32.totalorder %s18, 0
      %p80 = por %p78, %p79
      %p81 = scmp.ne.s32.totalorder %s73, %s75
      %p82 = scmp.eq.s32.totalorder %s23, 1
      %p83 = por %p81, %p82
      %p84 = scmp.ne.s32.totalorder %s75, %s76
      %p85 = scmp.eq.s32.totalorder %s23, 0
      %p86 = por %p84, %p85
      %p87 = scmp.ne.s32.totalorder %s75, %s76
      %p88 = scmp.eq.s32.totalorder %s24, 1
      %p89 = por %p87, %p88
      %p91 = scmp.ne.s32.totalorder %s76, %s90
      %p92 = scmp.eq.s32.totalorder %s24, 0
      %p93 = por %p91, %p92
      %s95 = sadd.s32 %s94, 1
      %p98 = scmp.eq.s32.totalorder %s18, 1
      %p99 = scmp.ne.s32.totalorder %s94, %s96
      %p100 = scmp.eq.s32.totalorder %s18, 0
      %p101 = por %p99, %p100
      %p102 = scmp.ne.s32.totalorder %s94, %s96
      %p103 = scmp.eq.s32.totalorder %s23, 1
      %p104 = por %p102, %p103
      %p105 = scmp.ne.s32.totalorder %s96, %s97
      %p106 = scmp.eq.s32.totalorder %s23, 0
      %p107 = por %p105, %p106
      %p108 = scmp.ne.s32.totalorder %s96, %s97
      %p109 = scmp.eq.s32.totalorder %s24, 1
      %p110 = por %p108, %p109
      %p112 = scmp.ne.s32.totalorder %s97, %s111
      %p113 = scmp.eq.s32.totalorder %s24, 0
      %p114 = por %p112, %p113
      %s116 = sadd.s32 %s115, 1
      %p119 = scmp.eq.s32.totalorder %s18, 1
      %p120 = scmp.ne.s32.totalorder %s115, %s117
      %p121 = scmp.eq.s32.totalorder %s18, 0
      %p122 = por %p120, %p121
      %p123 = scmp.ne.s32.totalorder %s115, %s117
      %p124 = scmp.eq.s32.totalorder %s23, 1
      %p125 = por %p123, %p124
      %p126 = scmp.ne.s32.totalorder %s117, %s118
      %p127 = scmp.eq.s32.totalorder %s23, 0
      %p128 = por %p126, %p127
      %p129 = scmp.ne.s32.totalorder %s117, %s118
      %p130 = scmp.eq.s32.totalorder %s24, 1
      %p131 = por %p129, %p130
      %p133 = scmp.ne.s32.totalorder %s118, %s132
      %p134 = scmp.eq.s32.totalorder %s24, 0
      %p135 = por %p133, %p134
      %s136 = ssub.s32 %s18, %s25
      %p137 = scmp.eq.s32.totalorder %s136, 0
      %s139 = sadd.s32 %s138, 1
      %s140 = scalar_select %p137, %s138, %s139
      %p143 = pneg %p137
      %p144 = scmp.eq.s32.totalorder %s18, 1
      %p145 = por %p143, %p144
      %p146 = scmp.ne.s32.totalorder %s138, %s141
      %p147 = scmp.eq.s32.totalorder %s18, 0
      %p148 = por %p146, %p147
      %p149 = scmp.ne.s32.totalorder %s138, %s141
      %p150 = scmp.eq.s32.totalorder %s23, 1
      %p151 = por %p149, %p150
      %p152 = scmp.ne.s32.totalorder %s141, %s142
      %p153 = scmp.eq.s32.totalorder %s23, 0
      %p154 = por %p152, %p153
      %p155 = scmp.ne.s32.totalorder %s141, %s142
      %p156 = scmp.eq.s32.totalorder %s24, 1
      %p157 = por %p155, %p156
      %p159 = scmp.ne.s32.totalorder %s142, %s158
      %p160 = scmp.eq.s32.totalorder %s24, 0
      %p161 = por %p159, %p160
      %p162 = scmp.le.s32.totalorder 1, %s18
      %p163 = scmp.lt.s32.totalorder %s18, 3
      %p164 = pnand %p162, %p163
      %p165 = pneg %p164
      // Predicated region
      $region9: #{tpu_custom_call.1} parent=5 // pred_check
        _
      $region10: #{tpu_custom_call.1} parent=5 // pred_check_branch
        %167 = sbr.rel (%p164) target = $region12
      $region11: #{tpu_custom_call.1} parent=5 // pred_region
        %s168 = ssub.s32 %s18, 1
        // Predicated region
        $region13: #{tpu_custom_call.1} parent=11 // pred_check
          %p169 = pneg %p65
        $region14: #{tpu_custom_call.1} parent=11 // pred_check_branch
          %171 = sbr.rel (%p169) target = $region16
        $region15: #{tpu_custom_call.1} parent=11 // pred_region
          %173 = vsyncadd [#allocation6], 0
          %s174 = sshll.u32 %s1, 4
          %s175 = int_to_ptr.hbm [resolvable:$true] %s174
          %s176 = sshll.u32 [#allocation5], 4
          %s177 = int_to_ptr.vmem [resolvable:$true] %s176
          %182 = dma.hbm_to_vmem [thread:$0]  %s175, 6144, %s177, [#allocation6], 64, 64, 4
        $region16: #{tpu_custom_call.1} parent=11 // pred_fallthru
          _
        // Predicated region
        $region17: #{tpu_custom_call.1} parent=11 // pred_check
          %p183 = pneg %p86
        $region18: #{tpu_custom_call.1} parent=11 // pred_check_branch
          %185 = sbr.rel (%p183) target = $region20
        $region19: #{tpu_custom_call.1} parent=11 // pred_region
          _
        $region20: #{tpu_custom_call.1} parent=11 // pred_fallthru
          _
        // Predicated region
        $region21: #{tpu_custom_call.1} parent=11 // pred_check
          %p186 = pneg %p107
        $region22: #{tpu_custom_call.1} parent=11 // pred_check_branch
          %188 = sbr.rel (%p186) target = $region24
        $region23: #{tpu_custom_call.1} parent=11 // pred_region
          %190 = vsyncadd [#allocation6], 0
          %s191 = sshll.u32 %s3, 4
          %s192 = int_to_ptr.hbm [resolvable:$true] %s191
          %s193 = sshll.u32 [#allocation7], 4
          %s194 = int_to_ptr.vmem [resolvable:$true] %s193
          %199 = dma.hbm_to_vmem [thread:$0]  %s192, 1024, %s194, [#allocation6], 64, 64, 4
        $region24: #{tpu_custom_call.1} parent=11 // pred_fallthru
          _
        // Predicated region
        $region25: #{tpu_custom_call.1} parent=11 // pred_check
          %p200 = pneg %p128
        $region26: #{tpu_custom_call.1} parent=11 // pred_check_branch
          %202 = sbr.rel (%p200) target = $region28
        $region27: #{tpu_custom_call.1} parent=11 // pred_region
          _
        $region28: #{tpu_custom_call.1} parent=11 // pred_fallthru
          _
      $region12: #{tpu_custom_call.1} parent=5 // pred_fallthru
        _
      %p203 = scmp.lt.s32.totalorder %s18, 2
      // Predicated region
      $region29: #{tpu_custom_call.1} parent=5 // pred_check
        %p204 = pneg %p203
      $region30: #{tpu_custom_call.1} parent=5 // pred_check_branch
        %206 = sbr.rel (%p204) target = $region32
      $region31: #{tpu_custom_call.1} parent=5 // pred_region
        // Predicated region
        $region33: #{tpu_custom_call.1} parent=31 // pred_check
          %p207 = pneg %p38
        $region34: #{tpu_custom_call.1} parent=31 // pred_check_branch
          %209 = sbr.rel (%p207) target = $region36
        $region35: #{tpu_custom_call.1} parent=31 // pred_region
          %s210 = sand.u32 %s28, 1
          %s211 = scalar_lea.sflag [#allocation3], %s210
          %s212 = sand.u32 %s28, 1
          %s213 = smul.addr %s212, 48
          %s214 = scalar_lea.vmem [#allocation2], %s213
          %216 = vsyncadd %s211, 0
          %s217 = smul.addr %s18, 6
          %s218 = smul.addr %s217, 8
          %s219 = scalar_lea.hbm %s0, %s218
          %s221 = sshll.u32 %s219, 4
          %s222 = int_to_ptr.hbm [resolvable:$true] %s221
          %s223 = sshll.u32 %s214, 4
          %s224 = int_to_ptr.vmem [resolvable:$true] %s223
          %226 = dma.hbm_to_vmem [thread:$0]  %s222, 768, %s224, %s211
        $region36: #{tpu_custom_call.1} parent=31 // pred_fallthru
          _
      $region32: #{tpu_custom_call.1} parent=5 // pred_fallthru
        _
      %p227 = scmp.le.s32.totalorder 1, %s18
      %p228 = scmp.lt.s32.totalorder %s18, 3
      %p229 = pnand %p227, %p228
      %p230 = pneg %p229
      // Predicated region
      $region37: #{tpu_custom_call.1} parent=5 // pred_check
        _
      $region38: #{tpu_custom_call.1} parent=5 // pred_check_branch
        %232 = sbr.rel (%p229) target = $region40
      $region39: #{tpu_custom_call.1} parent=5 // pred_region
        %s233 = ssub.s32 %s18, 1
        %s234 = sand.u32 %s31, 1
        %s235 = scalar_lea.sflag [#allocation3], %s234
        %s236 = sand.u32 %s31, 1
        %s237 = smul.addr %s236, 48
        %s238 = scalar_lea.vmem [#allocation2], %s237
        // Predicated region
        $region41: #{tpu_custom_call.1} parent=39 // pred_check
          %p239 = pneg %p44
        $region42: #{tpu_custom_call.1} parent=39 // pred_check_branch
          %241 = sbr.rel (%p239) target = $region44
        $region43: #{tpu_custom_call.1} parent=39 // pred_region
          %243 = dma.done %s235, 768
        $region44: #{tpu_custom_call.1} parent=39 // pred_fallthru
          _
        // Predicated region
        $region45: #{tpu_custom_call.1} parent=39 // pred_check
          %p244 = pneg %p65
        $region46: #{tpu_custom_call.1} parent=39 // pred_check_branch
          %246 = sbr.rel (%p244) target = $region48
        $region47: #{tpu_custom_call.1} parent=39 // pred_region
          %248 = dma.done [#allocation6], 6144
        $region48: #{tpu_custom_call.1} parent=39 // pred_fallthru
          _
        // Predicated region
        $region49: #{tpu_custom_call.1} parent=39 // pred_check
          %p249 = pneg %p107
        $region50: #{tpu_custom_call.1} parent=39 // pred_check_branch
          %251 = sbr.rel (%p249) target = $region52
        $region51: #{tpu_custom_call.1} parent=39 // pred_region
          %253 = dma.done [#allocation6], 1024
        $region52: #{tpu_custom_call.1} parent=39 // pred_fallthru
          _
        %s254 = sand.u32 %s31, 1
        %s255 = scalar_lea.sflag [#allocation3], %s254
        %s256 = sand.u32 %s31, 1
        %s257 = smul.addr %s256, 48
        %s258 = scalar_lea.vmem [#allocation2], %s257
        %p259 = pneg %p44
        %p260 = pneg %p41
        %p261 = pneg %p65
        %p262 = pneg %p62
        %p263 = pneg %p86
        %p264 = pneg %p83
        %p265 = pneg %p107
        %p266 = pneg %p104
        %p267 = pneg %p128
        %p268 = pneg %p125
        %p269 = pneg %p154
        %p270 = pneg %p151
        %s271 = sand.u32 %s141, 1
        %s272 = scalar_lea.sflag [#allocation4], %s271
        %s273 = sand.u32 %s141, 1
        %s274 = smul.addr %s273, 8
        %s275 = scalar_lea.vmem [#allocation8], %s274
        %v276 = vld [vmem:[%s238] sm:$0xff]
        %v277 = vld [vmem:[%s238 + $0x8] sm:$0xff]
        %v278 = vld [vmem:[%s238 + $0x10] sm:$0xff]
        %v279 = vld [vmem:[%s238 + $0x18] sm:$0xff]
        %v280 = vld [vmem:[%s238 + $0x20] sm:$0xff]
        %v281 = vld [vmem:[%s238 + $0x28] sm:$0xff]
        %v282 = vpack.c.bf16 %v276, %v276
        %v283 = vpack.c.bf16 %v277, %v277
        %v284 = vpack.c.bf16 %v278, %v278
        %v285 = vpack.c.bf16 %v279, %v279
        %v286 = vpack.c.bf16 %v280, %v280
        %v287 = vpack.c.bf16 %v281, %v281
        %v288 = vld [vmem:[#allocation5] sm:$0xf]
        %v289 = vld [vmem:[#allocation5 + $0x4] sm:$0xf]
        %v290 = vld [vmem:[#allocation5 + $0x8] sm:$0xf]
        %v291 = vld [vmem:[#allocation5 + $0xc] sm:$0xf]
        %v292 = vld [vmem:[#allocation5 + $0x10] sm:$0xf]
        %v293 = vld [vmem:[#allocation5 + $0x14] sm:$0xf]
        %v294 = vld [vmem:[#allocation5 + $0x18] sm:$0xf]
        %v295 = vld [vmem:[#allocation5 + $0x1c] sm:$0xf]
        %v296 = vld [vmem:[#allocation5 + $0x20] sm:$0xf]
        %v297 = vld [vmem:[#allocation5 + $0x24] sm:$0xf]
        %v298 = vld [vmem:[#allocation5 + $0x28] sm:$0xf]
        %v299 = vld [vmem:[#allocation5 + $0x2c] sm:$0xf]
        %v300 = vld [vmem:[#allocation5 + $0x30] sm:$0xf]
        %v301 = vld [vmem:[#allocation5 + $0x34] sm:$0xf]
        %v302 = vld [vmem:[#allocation5 + $0x38] sm:$0xf]
        %v303 = vld [vmem:[#allocation5 + $0x3c] sm:$0xf]
        %v304 = vld [vmem:[#allocation5 + $0x40] sm:$0xf]
        %v305 = vld [vmem:[#allocation5 + $0x44] sm:$0xf]
        %v306 = vld [vmem:[#allocation5 + $0x48] sm:$0xf]
        %v307 = vld [vmem:[#allocation5 + $0x4c] sm:$0xf]
        %v308 = vld [vmem:[#allocation5 + $0x50] sm:$0xf]
        %v309 = vld [vmem:[#allocation5 + $0x54] sm:$0xf]
        %v310 = vld [vmem:[#allocation5 + $0x58] sm:$0xf]
        %v311 = vld [vmem:[#allocation5 + $0x5c] sm:$0xf]
        %v312 = vld [vmem:[#allocation5 + $0x60] sm:$0xf]
        %v313 = vld [vmem:[#allocation5 + $0x64] sm:$0xf]
        %v314 = vld [vmem:[#allocation5 + $0x68] sm:$0xf]
        %v315 = vld [vmem:[#allocation5 + $0x6c] sm:$0xf]
        %v316 = vld [vmem:[#allocation5 + $0x70] sm:$0xf]
        %v317 = vld [vmem:[#allocation5 + $0x74] sm:$0xf]
        %v318 = vld [vmem:[#allocation5 + $0x78] sm:$0xf]
        %v319 = vld [vmem:[#allocation5 + $0x7c] sm:$0xf]
        %v320 = vld [vmem:[#allocation5 + $0x80] sm:$0xf]
        %v321 = vld [vmem:[#allocation5 + $0x84] sm:$0xf]
        %v322 = vld [vmem:[#allocation5 + $0x88] sm:$0xf]
        %v323 = vld [vmem:[#allocation5 + $0x8c] sm:$0xf]
        %v324 = vld [vmem:[#allocation5 + $0x90] sm:$0xf]
        %v325 = vld [vmem:[#allocation5 + $0x94] sm:$0xf]
        %v326 = vld [vmem:[#allocation5 + $0x98] sm:$0xf]
        %v327 = vld [vmem:[#allocation5 + $0x9c] sm:$0xf]
        %v328 = vld [vmem:[#allocation5 + $0xa0] sm:$0xf]
        %v329 = vld [vmem:[#allocation5 + $0xa4] sm:$0xf]
        %v330 = vld [vmem:[#allocation5 + $0xa8] sm:$0xf]
        %v331 = vld [vmem:[#allocation5 + $0xac] sm:$0xf]
        %v332 = vld [vmem:[#allocation5 + $0xb0] sm:$0xf]
        %v333 = vld [vmem:[#allocation5 + $0xb4] sm:$0xf]
        %v334 = vld [vmem:[#allocation5 + $0xb8] sm:$0xf]
        %v335 = vld [vmem:[#allocation5 + $0xbc] sm:$0xf]
        %v336 = vld [vmem:[#allocation5 + $0xc0] sm:$0xf]
        %v337 = vld [vmem:[#allocation5 + $0xc4] sm:$0xf]
        %v338 = vld [vmem:[#allocation5 + $0xc8] sm:$0xf]
        %v339 = vld [vmem:[#allocation5 + $0xcc] sm:$0xf]
        %v340 = vld [vmem:[#allocation5 + $0xd0] sm:$0xf]
        %v341 = vld [vmem:[#allocation5 + $0xd4] sm:$0xf]
        %v342 = vld [vmem:[#allocation5 + $0xd8] sm:$0xf]
        %v343 = vld [vmem:[#allocation5 + $0xdc] sm:$0xf]
        %v344 = vld [vmem:[#allocation5 + $0xe0] sm:$0xf]
        %v345 = vld [vmem:[#allocation5 + $0xe4] sm:$0xf]
        %v346 = vld [vmem:[#allocation5 + $0xe8] sm:$0xf]
        %v347 = vld [vmem:[#allocation5 + $0xec] sm:$0xf]
        %v348 = vld [vmem:[#allocation5 + $0xf0] sm:$0xf]
        %v349 = vld [vmem:[#allocation5 + $0xf4] sm:$0xf]
        %v350 = vld [vmem:[#allocation5 + $0xf8] sm:$0xf]
        %v351 = vld [vmem:[#allocation5 + $0xfc] sm:$0xf]
        %v352 = vld [vmem:[#allocation5 + $0x100] sm:$0xf]
        %v353 = vld [vmem:[#allocation5 + $0x104] sm:$0xf]
        %v354 = vld [vmem:[#allocation5 + $0x108] sm:$0xf]
        %v355 = vld [vmem:[#allocation5 + $0x10c] sm:$0xf]
        %v356 = vld [vmem:[#allocation5 + $0x110] sm:$0xf]
        %v357 = vld [vmem:[#allocation5 + $0x114] sm:$0xf]
        %v358 = vld [vmem:[#allocation5 + $0x118] sm:$0xf]
        %v359 = vld [vmem:[#allocation5 + $0x11c] sm:$0xf]
        %v360 = vld [vmem:[#allocation5 + $0x120] sm:$0xf]
        %v361 = vld [vmem:[#allocation5 + $0x124] sm:$0xf]
        %v362 = vld [vmem:[#allocation5 + $0x128] sm:$0xf]
        %v363 = vld [vmem:[#allocation5 + $0x12c] sm:$0xf]
        %v364 = vld [vmem:[#allocation5 + $0x130] sm:$0xf]
        %v365 = vld [vmem:[#allocation5 + $0x134] sm:$0xf]
        %v366 = vld [vmem:[#allocation5 + $0x138] sm:$0xf]
        %v367 = vld [vmem:[#allocation5 + $0x13c] sm:$0xf]
        %v368 = vld [vmem:[#allocation5 + $0x140] sm:$0xf]
        %v369 = vld [vmem:[#allocation5 + $0x144] sm:$0xf]
        %v370 = vld [vmem:[#allocation5 + $0x148] sm:$0xf]
        %v371 = vld [vmem:[#allocation5 + $0x14c] sm:$0xf]
        %v372 = vld [vmem:[#allocation5 + $0x150] sm:$0xf]
        %v373 = vld [vmem:[#allocation5 + $0x154] sm:$0xf]
        %v374 = vld [vmem:[#allocation5 + $0x158] sm:$0xf]
        %v375 = vld [vmem:[#allocation5 + $0x15c] sm:$0xf]
        %v376 = vld [vmem:[#allocation5 + $0x160] sm:$0xf]
        %v377 = vld [vmem:[#allocation5 + $0x164] sm:$0xf]
        %v378 = vld [vmem:[#allocation5 + $0x168] sm:$0xf]
        %v379 = vld [vmem:[#allocation5 + $0x16c] sm:$0xf]
        %v380 = vld [vmem:[#allocation5 + $0x170] sm:$0xf]
        %v381 = vld [vmem:[#allocation5 + $0x174] sm:$0xf]
        %v382 = vld [vmem:[#allocation5 + $0x178] sm:$0xf]
        %v383 = vld [vmem:[#allocation5 + $0x17c] sm:$0xf]
        %v384 = vld [vmem:[%s2] sm:$0x1]
        %v386 = vperm.slane %v384, 0
        %v484 = vunpack.c.l.b16 %v288
        %v485 = vunpack.c.l.b16 %v289
        %v486 = vunpack.c.l.b16 %v290
        %v487 = vunpack.c.l.b16 %v291
        %v488 = vunpack.c.l.b16 %v292
        %v489 = vunpack.c.l.b16 %v293
        %v490 = vunpack.c.l.b16 %v294
        %v491 = vunpack.c.l.b16 %v295
        %v492 = vunpack.c.l.b16 %v296
        %v493 = vunpack.c.l.b16 %v297
        %v494 = vunpack.c.l.b16 %v298
        %v495 = vunpack.c.l.b16 %v299
        %v496 = vunpack.c.l.b16 %v300
        %v497 = vunpack.c.l.b16 %v301
        %v498 = vunpack.c.l.b16 %v302
        %v499 = vunpack.c.l.b16 %v303
        %v500 = vunpack.c.l.b16 %v304
        %v501 = vunpack.c.l.b16 %v305
        %v502 = vunpack.c.l.b16 %v306
        %v503 = vunpack.c.l.b16 %v307
        %v504 = vunpack.c.l.b16 %v308
        %v505 = vunpack.c.l.b16 %v309
        %v506 = vunpack.c.l.b16 %v310
        %v507 = vunpack.c.l.b16 %v311
        %v508 = vunpack.c.l.b16 %v312
        %v509 = vunpack.c.l.b16 %v313
        %v510 = vunpack.c.l.b16 %v314
        %v511 = vunpack.c.l.b16 %v315
        %v512 = vunpack.c.l.b16 %v316
        %v513 = vunpack.c.l.b16 %v317
        %v514 = vunpack.c.l.b16 %v318
        %v515 = vunpack.c.l.b16 %v319
        %v516 = vunpack.c.l.b16 %v320
        %v517 = vunpack.c.l.b16 %v321
        %v518 = vunpack.c.l.b16 %v322
        %v519 = vunpack.c.l.b16 %v323
        %v520 = vunpack.c.l.b16 %v324
        %v521 = vunpack.c.l.b16 %v325
        %v522 = vunpack.c.l.b16 %v326
        %v523 = vunpack.c.l.b16 %v327
        %v524 = vunpack.c.l.b16 %v328
        %v525 = vunpack.c.l.b16 %v329
        %v526 = vunpack.c.l.b16 %v330
        %v527 = vunpack.c.l.b16 %v331
        %v528 = vunpack.c.l.b16 %v332
        %v529 = vunpack.c.l.b16 %v333
        %v530 = vunpack.c.l.b16 %v334
        %v531 = vunpack.c.l.b16 %v335
        %v532 = vunpack.c.l.b16 %v336
        %v533 = vunpack.c.l.b16 %v337
        %v534 = vunpack.c.l.b16 %v338
        %v535 = vunpack.c.l.b16 %v339
        %v536 = vunpack.c.l.b16 %v340
        %v537 = vunpack.c.l.b16 %v341
        %v538 = vunpack.c.l.b16 %v342
        %v539 = vunpack.c.l.b16 %v343
        %v540 = vunpack.c.l.b16 %v344
        %v541 = vunpack.c.l.b16 %v345
        %v542 = vunpack.c.l.b16 %v346
        %v543 = vunpack.c.l.b16 %v347
        %v544 = vunpack.c.l.b16 %v348
        %v545 = vunpack.c.l.b16 %v349
        %v546 = vunpack.c.l.b16 %v350
        %v547 = vunpack.c.l.b16 %v351
        %v548 = vunpack.c.l.b16 %v352
        %v549 = vunpack.c.l.b16 %v353
        %v550 = vunpack.c.l.b16 %v354
        %v551 = vunpack.c.l.b16 %v355
        %v552 = vunpack.c.l.b16 %v356
        %v553 = vunpack.c.l.b16 %v357
        %v554 = vunpack.c.l.b16 %v358
        %v555 = vunpack.c.l.b16 %v359
        %v556 = vunpack.c.l.b16 %v360
        %v557 = vunpack.c.l.b16 %v361
        %v558 = vunpack.c.l.b16 %v362
        %v559 = vunpack.c.l.b16 %v363
        %v560 = vunpack.c.l.b16 %v364
        %v561 = vunpack.c.l.b16 %v365
        %v562 = vunpack.c.l.b16 %v366
        %v563 = vunpack.c.l.b16 %v367
        %v564 = vunpack.c.l.b16 %v368
        %v565 = vunpack.c.l.b16 %v369
        %v566 = vunpack.c.l.b16 %v370
        %v567 = vunpack.c.l.b16 %v371
        %v568 = vunpack.c.l.b16 %v372
        %v569 = vunpack.c.l.b16 %v373
        %v570 = vunpack.c.l.b16 %v374
        %v571 = vunpack.c.l.b16 %v375
        %v572 = vunpack.c.l.b16 %v376
        %v573 = vunpack.c.l.b16 %v377
        %v574 = vunpack.c.l.b16 %v378
        %v575 = vunpack.c.l.b16 %v379
        %v576 = vunpack.c.l.b16 %v380
        %v577 = vunpack.c.l.b16 %v381
        %v578 = vunpack.c.l.b16 %v382
        %v579 = vunpack.c.l.b16 %v383
        %v580 = vpack.c.b16 %v485, %v484
        %v581 = vpack.c.b16 %v487, %v486
        %v582 = vpack.c.b16 %v489, %v488
        %v583 = vpack.c.b16 %v491, %v490
        %v584 = vpack.c.b16 %v493, %v492
        %v585 = vpack.c.b16 %v495, %v494
        %v586 = vpack.c.b16 %v497, %v496
        %v587 = vpack.c.b16 %v499, %v498
        %v588 = vpack.c.b16 %v501, %v500
        %v589 = vpack.c.b16 %v503, %v502
        %v590 = vpack.c.b16 %v505, %v504
        %v591 = vpack.c.b16 %v507, %v506
        %v592 = vpack.c.b16 %v509, %v508
        %v593 = vpack.c.b16 %v511, %v510
        %v594 = vpack.c.b16 %v513, %v512
        %v595 = vpack.c.b16 %v515, %v514
        %v596 = vpack.c.b16 %v517, %v516
        %v597 = vpack.c.b16 %v519, %v518
        %v598 = vpack.c.b16 %v521, %v520
        %v599 = vpack.c.b16 %v523, %v522
        %v600 = vpack.c.b16 %v525, %v524
        %v601 = vpack.c.b16 %v527, %v526
        %v602 = vpack.c.b16 %v529, %v528
        %v603 = vpack.c.b16 %v531, %v530
        %v604 = vpack.c.b16 %v533, %v532
        %v605 = vpack.c.b16 %v535, %v534
        %v606 = vpack.c.b16 %v537, %v536
        %v607 = vpack.c.b16 %v539, %v538
        %v608 = vpack.c.b16 %v541, %v540
        %v609 = vpack.c.b16 %v543, %v542
        %v610 = vpack.c.b16 %v545, %v544
        %v611 = vpack.c.b16 %v547, %v546
        %v612 = vpack.c.b16 %v549, %v548
        %v613 = vpack.c.b16 %v551, %v550
        %v614 = vpack.c.b16 %v553, %v552
        %v615 = vpack.c.b16 %v555, %v554
        %v616 = vpack.c.b16 %v557, %v556
        %v617 = vpack.c.b16 %v559, %v558
        %v618 = vpack.c.b16 %v561, %v560
        %v619 = vpack.c.b16 %v563, %v562
        %v620 = vpack.c.b16 %v565, %v564
        %v621 = vpack.c.b16 %v567, %v566
        %v622 = vpack.c.b16 %v569, %v568
        %v623 = vpack.c.b16 %v571, %v570
        %v624 = vpack.c.b16 %v573, %v572
        %v625 = vpack.c.b16 %v575, %v574
        %v626 = vpack.c.b16 %v577, %v576
        %v627 = vpack.c.b16 %v579, %v578
        %676 = vmatpush.bf16.msra.mxu0 %v587
        %677 = vmatpush.bf16.msra.mxu0 %v586
        %678 = vmatpush.bf16.msra.mxu0 %v585
        %679 = vmatpush.bf16.msra.mxu0 %v584
        %680 = vmatpush.bf16.msra.mxu0 %v583
        %681 = vmatpush.bf16.msra.mxu0 %v582
        %682 = vmatpush.bf16.msra.mxu0 %v581
        %683 = vmatpush.bf16.msra.mxu0 %v580
        %684 = vmatmul.bf16.gmra.mxu0 %v282
        %v685 = vpop.f32.mrf.mxu0
        %v686 = vadd.f32 %v386, %v685
        %v687 = vpop.f32.mrf.mxu0
        %688 = vdwg.mxu0
        %689 = vmatpush.bf16.msra.mxu0 %v595
        %690 = vmatpush.bf16.msra.mxu0 %v594
        %691 = vmatpush.bf16.msra.mxu0 %v593
        %692 = vmatpush.bf16.msra.mxu0 %v592
        %693 = vmatpush.bf16.msra.mxu0 %v591
        %694 = vmatpush.bf16.msra.mxu0 %v590
        %695 = vmatpush.bf16.msra.mxu0 %v589
        %696 = vmatpush.bf16.msra.mxu0 %v588
        %697 = vmatmul.bf16.gmra.mxu0 %v283
        %v698 = vpop.f32.mrf.mxu0
        %v699 = vadd.f32 %v686, %v698
        %v700 = vpop.f32.mrf.mxu0
        %701 = vdwg.mxu0
        %702 = vmatpush.bf16.msra.mxu0 %v603
        %703 = vmatpush.bf16.msra.mxu0 %v602
        %704 = vmatpush.bf16.msra.mxu0 %v601
        %705 = vmatpush.bf16.msra.mxu0 %v600
        %706 = vmatpush.bf16.msra.mxu0 %v599
        %707 = vmatpush.bf16.msra.mxu0 %v598
        %708 = vmatpush.bf16.msra.mxu0 %v597
        %709 = vmatpush.bf16.msra.mxu0 %v596
        %710 = vmatmul.bf16.gmra.mxu0 %v284
        %v711 = vpop.f32.mrf.mxu0
        %v712 = vadd.f32 %v699, %v711
        %v713 = vpop.f32.mrf.mxu0
        %714 = vdwg.mxu0
        %715 = vmatpush.bf16.msra.mxu0 %v611
        %716 = vmatpush.bf16.msra.mxu0 %v610
        %717 = vmatpush.bf16.msra.mxu0 %v609
        %718 = vmatpush.bf16.msra.mxu0 %v608
        %719 = vmatpush.bf16.msra.mxu0 %v607
        %720 = vmatpush.bf16.msra.mxu0 %v606
        %721 = vmatpush.bf16.msra.mxu0 %v605
        %722 = vmatpush.bf16.msra.mxu0 %v604
        %723 = vmatmul.bf16.gmra.mxu0 %v285
        %v724 = vpop.f32.mrf.mxu0
        %v725 = vadd.f32 %v712, %v724
        %v726 = vpop.f32.mrf.mxu0
        %727 = vdwg.mxu0
        %728 = vmatpush.bf16.msra.mxu0 %v619
        %729 = vmatpush.bf16.msra.mxu0 %v618
        %730 = vmatpush.bf16.msra.mxu0 %v617
        %731 = vmatpush.bf16.msra.mxu0 %v616
        %732 = vmatpush.bf16.msra.mxu0 %v615
        %733 = vmatpush.bf16.msra.mxu0 %v614
        %734 = vmatpush.bf16.msra.mxu0 %v613
        %735 = vmatpush.bf16.msra.mxu0 %v612
        %736 = vmatmul.bf16.gmra.mxu0 %v286
        %v737 = vpop.f32.mrf.mxu0
        %v738 = vadd.f32 %v725, %v737
        %v739 = vpop.f32.mrf.mxu0
        %740 = vdwg.mxu0
        %741 = vmatpush.bf16.msra.mxu0 %v627
        %742 = vmatpush.bf16.msra.mxu0 %v626
        %743 = vmatpush.bf16.msra.mxu0 %v625
        %744 = vmatpush.bf16.msra.mxu0 %v624
        %745 = vmatpush.bf16.msra.mxu0 %v623
        %746 = vmatpush.bf16.msra.mxu0 %v622
        %747 = vmatpush.bf16.msra.mxu0 %v621
        %748 = vmatpush.bf16.msra.mxu0 %v620
        %749 = vmatmul.bf16.gmra.mxu0 %v287
        %v750 = vpop.f32.mrf.mxu0
        %v751 = vadd.f32 %v738, %v750
        %v752 = vpop.f32.mrf.mxu0
        %753 = vdwg.mxu0
        %v754 = vmax.f32 %v751, 0.0
        %v755 = vpack.c.bf16 %v754, %v754
        %v756 = vld [vmem:[#allocation7] sm:$0xf]
        %v757 = vld [vmem:[#allocation7 + $0x4] sm:$0xf]
        %v758 = vld [vmem:[#allocation7 + $0x8] sm:$0xf]
        %v759 = vld [vmem:[#allocation7 + $0xc] sm:$0xf]
        %v760 = vld [vmem:[#allocation7 + $0x10] sm:$0xf]
        %v761 = vld [vmem:[#allocation7 + $0x14] sm:$0xf]
        %v762 = vld [vmem:[#allocation7 + $0x18] sm:$0xf]
        %v763 = vld [vmem:[#allocation7 + $0x1c] sm:$0xf]
        %v764 = vld [vmem:[#allocation7 + $0x20] sm:$0xf]
        %v765 = vld [vmem:[#allocation7 + $0x24] sm:$0xf]
        %v766 = vld [vmem:[#allocation7 + $0x28] sm:$0xf]
        %v767 = vld [vmem:[#allocation7 + $0x2c] sm:$0xf]
        %v768 = vld [vmem:[#allocation7 + $0x30] sm:$0xf]
        %v769 = vld [vmem:[#allocation7 + $0x34] sm:$0xf]
        %v770 = vld [vmem:[#allocation7 + $0x38] sm:$0xf]
        %v771 = vld [vmem:[#allocation7 + $0x3c] sm:$0xf]
        %v772 = vld [vmem:[%s4] sm:$0x1]
        %v774 = vperm.slane %v772, 0
        %v792 = vunpack.c.l.b16 %v756
        %v793 = vunpack.c.l.b16 %v757
        %v794 = vunpack.c.l.b16 %v758
        %v795 = vunpack.c.l.b16 %v759
        %v796 = vunpack.c.l.b16 %v760
        %v797 = vunpack.c.l.b16 %v761
        %v798 = vunpack.c.l.b16 %v762
        %v799 = vunpack.c.l.b16 %v763
        %v800 = vunpack.c.l.b16 %v764
        %v801 = vunpack.c.l.b16 %v765
        %v802 = vunpack.c.l.b16 %v766
        %v803 = vunpack.c.l.b16 %v767
        %v804 = vunpack.c.l.b16 %v768
        %v805 = vunpack.c.l.b16 %v769
        %v806 = vunpack.c.l.b16 %v770
        %v807 = vunpack.c.l.b16 %v771
        %v808 = vpack.c.b16 %v793, %v792
        %v809 = vpack.c.b16 %v795, %v794
        %v810 = vpack.c.b16 %v797, %v796
        %v811 = vpack.c.b16 %v799, %v798
        %v812 = vpack.c.b16 %v801, %v800
        %v813 = vpack.c.b16 %v803, %v802
        %v814 = vpack.c.b16 %v805, %v804
        %v815 = vpack.c.b16 %v807, %v806
        %824 = vmatpush.bf16.msra.mxu0 %v815
        %825 = vmatpush.bf16.msra.mxu0 %v814
        %826 = vmatpush.bf16.msra.mxu0 %v813
        %827 = vmatpush.bf16.msra.mxu0 %v812
        %828 = vmatpush.bf16.msra.mxu0 %v811
        %829 = vmatpush.bf16.msra.mxu0 %v810
        %830 = vmatpush.bf16.msra.mxu0 %v809
        %831 = vmatpush.bf16.msra.mxu0 %v808
        %832 = vmatmul.bf16.gmra.mxu0 %v755
        %v833 = vpop.f32.mrf.mxu0
        %v834 = vadd.f32 %v774, %v833
        %v835 = vpop.f32.mrf.mxu0
        %836 = vdwg.mxu0
        %v837 = vmax.f32 %v834, 0.0
        %838 = vst [vmem:[%s275] sm:$0xff] %v837
        %s839 = sand.u32 %s141, 1
        %s840 = scalar_lea.sflag [#allocation4], %s839
        %s841 = sand.u32 %s141, 1
        %s842 = smul.addr %s841, 8
        %s843 = scalar_lea.vmem [#allocation8], %s842
        // Predicated region
        $region53: #{tpu_custom_call.1} parent=39 // pred_check
          %p844 = pneg %p151
        $region54: #{tpu_custom_call.1} parent=39 // pred_check_branch
          %846 = sbr.rel (%p844) target = $region56
        $region55: #{tpu_custom_call.1} parent=39 // pred_region
          %848 = vsyncadd %s840, 0
          %s849 = smul.addr %s23, 8
          %s850 = scalar_lea.hbm %s5, %s849
          %s852 = sshll.u32 %s843, 4
          %s853 = int_to_ptr.vmem [resolvable:$true] %s852
          %s854 = sshll.u32 %s850, 4
          %s855 = int_to_ptr.hbm [resolvable:$true] %s854
          %857 = dma.vmem_to_hbm [thread:$0]  %s853, 128, %s855, %s840
        $region56: #{tpu_custom_call.1} parent=39 // pred_fallthru
          _
      $region40: #{tpu_custom_call.1} parent=5 // pred_fallthru
        _
      %p858 = scmp.le.s32.totalorder 2, %s18
      // Predicated region
      $region57: #{tpu_custom_call.1} parent=5 // pred_check
        %p859 = pneg %p858
      $region58: #{tpu_custom_call.1} parent=5 // pred_check_branch
        %861 = sbr.rel (%p859) target = $region60
      $region59: #{tpu_custom_call.1} parent=5 // pred_region
        %s862 = ssub.s32 %s18, 2
        // Predicated region
        $region61: #{tpu_custom_call.1} parent=59 // pred_check
          %p863 = pneg %p157
        $region62: #{tpu_custom_call.1} parent=59 // pred_check_branch
          %865 = sbr.rel (%p863) target = $region64
        $region63: #{tpu_custom_call.1} parent=59 // pred_region
          %s866 = sand.u32 %s142, 1
          %s867 = scalar_lea.sflag [#allocation4], %s866
          %s868 = sand.u32 %s142, 1
          %s869 = smul.addr %s868, 8
          %s870 = scalar_lea.vmem [#allocation8], %s869
          %872 = dma.done %s867, 128
        $region64: #{tpu_custom_call.1} parent=59 // pred_fallthru
          _
      $region60: #{tpu_custom_call.1} parent=5 // pred_fallthru
        _
    $region6: #{tpu_custom_call.1} parent=1 // loop_footer
      %s22 = sadd.s32 1, %s18
    $region7: #{tpu_custom_call.1} parent=1 // loop_footer_branch
      %17 = sbr.rel target = $region3
    $region8: #{tpu_custom_call.1} parent=1 // loop_exit
      _
    %873 = vsyncpa [#allocation3], 1
    %s874 = scalar_lea.sflag [#allocation3], 1
    %875 = vsyncpa %s874, 1
    %876 = vsyncpa [#allocation6], 1
    %877 = vsyncpa [#allocation4], 1
    %s878 = scalar_lea.sflag [#allocation4], 1
    %879 = vsyncpa %s878, 1

</llo_original>
